<compile_context>
chip_gen: v7x
topology: tpu7x:2x2x1
jax: 0.10.0
libtpu: 0.0.40
codegen_flags: <defaults>
</compile_context>

<pallas_src>
import jax
import jax.numpy as jnp
from jax.experimental import pallas as pl
from jax.experimental.pallas import tpu as pltpu


def _round_up(x, m):
    return (x + m - 1) // m * m


def _cdiv(a, b):
    return -(-a // b)


def _mlp_kernel(x_ref,
                w1_ref, b1_ref,
                w2_ref, b2_ref,
                w3_ref, b3_ref,
                w4_ref, b4_ref,
                w5t_ref, b5_ref,
                o_ref):
    """Fused 5-layer MLP on one (tb, in_features) activation tile.

    Weights bf16 (resident across grid steps), biases f32, MXU accumulation
    f32.  Layer 5 uses the transposed weight row so the store is a lane-dense
    (1, tb) vector rather than a (tb, 128) tile with one real column.
    """
    h = x_ref[...].astype(jnp.bfloat16)    # single in-kernel cast; x stays f32 in HBM

    h = jnp.dot(h, w1_ref[...], preferred_element_type=jnp.float32) + b1_ref[...]
    h = jnp.maximum(h, 0.0).astype(jnp.bfloat16)
    # dropout(p=0.052..., training=False) == identity at inference.

    h = jnp.dot(h, w2_ref[...], preferred_element_type=jnp.float32) + b2_ref[...]
    h = jnp.maximum(h, 0.0).astype(jnp.bfloat16)

    h = jnp.dot(h, w3_ref[...], preferred_element_type=jnp.float32) + b3_ref[...]
    h = jnp.maximum(h, 0.0).astype(jnp.bfloat16)

    h = jnp.dot(h, w4_ref[...], preferred_element_type=jnp.float32) + b4_ref[...]
    h = jnp.maximum(h, 0.0).astype(jnp.bfloat16)

    # Layer 5: (1, d4_pad) . (tb, d4_pad)^T -> (1, tb); lane-dense output.
    out = jax.lax.dot_general(
        w5t_ref[...], h,
        dimension_numbers=(((1,), (1,)), ((), ())),
        preferred_element_type=jnp.float32,
    ) + b5_ref[...]
    o_ref[...] = out.astype(o_ref.dtype)


def _choose_tile_b(B):
    """Pick the batch tile size.

    <= 128 rows: one full-array tile (no padding, no partial block).
    Otherwise choose from {1024, 512, 256, 128}: prefer >= 2 grid steps
    (v7x megacore), then minimal padding waste, then the largest tile.
    """
    if B <= 128:
        # TODO(synk): batches this small leave one v7x TensorCore idle; the
        # total work is negligible so a 2-way split is not worth the overhead.
        return B

    def score(tb):
        n = _cdiv(B, tb)
        waste = n * tb - B
        return (n < 2, waste, -tb)

    return min((1024, 512, 256, 128), key=score)


def linear_mlp_forward(x, params):
    """x: (B, ML, NF) float32.  params: list of (w, b) with w:(in,out), b:(1,out)."""
    B = x.shape[0]
    x2d = x.reshape(B, -1)                     # flatten (metadata only, no copy/cast)
    in_features = x2d.shape[1]

    dims = [in_features] + [w.shape[1] for w, _ in params]
    # Pad hidden widths to lane multiples of 128 (zero padding is bit-exact:
    # relu(0)=0 and zero weight rows/cols contribute nothing).  in_features is
    # left unpadded: a full-array last-dim block is legal and padding would
    # only inflate x HBM traffic.
    padded_dims = [in_features] + [_round_up(d, 128) for d in dims[1:-1]]

    hidden = []
    for li, (w, b) in enumerate(params[:-1]):
        d_in_pad, d_out_pad = padded_dims[li], padded_dims[li + 1]
        w_p = (jnp.zeros((d_in_pad, d_out_pad), jnp.bfloat16)
               .at[: w.shape[0], : w.shape[1]].set(w.astype(jnp.bfloat16)))
        b_p = (jnp.zeros((1, d_out_pad), jnp.float32)
               .at[:, : b.shape[1]].set(b.astype(jnp.float32)))
        hidden.append((w_p, b_p))

    # Final layer (out features == 1): store W5 transposed as a (1, d4_pad) row.
    w5, b5 = params[-1]
    d4_pad = padded_dims[-1]
    w5t = (jnp.zeros((1, d4_pad), jnp.bfloat16)
           .at[:, : w5.shape[0]].set(w5.astype(jnp.bfloat16).T))
    b5p = b5.reshape(1, 1).astype(jnp.float32)

    tb = _choose_tile_b(B)
    num_tiles = _cdiv(B, tb)

    flat_args = [x2d]
    in_specs = [pl.BlockSpec((tb, in_features), lambda i: (i, 0))]
    for w_p, b_p in hidden:
        flat_args += [w_p, b_p]
        # Constant index_maps: weights/biases fetched once, resident in VMEM.
        in_specs += [pl.BlockSpec(w_p.shape, lambda i: (0, 0)),
                     pl.BlockSpec(b_p.shape, lambda i: (0, 0))]
    flat_args += [w5t, b5p]
    in_specs += [pl.BlockSpec(w5t.shape, lambda i: (0, 0)),
                 pl.BlockSpec(b5p.shape, lambda i: (0, 0))]

    out_tiles = pl.pallas_call(
        _mlp_kernel,
        out_shape=jax.ShapeDtypeStruct((num_tiles, 1, tb), jnp.float32),
        grid=(num_tiles,),
        in_specs=in_specs,
        # Squeezed leading dim -> kernel sees a lane-dense (1, tb) output block.
        out_specs=pl.BlockSpec((None, 1, tb), lambda i: (i, 0, 0)),
        compiler_params=pltpu.CompilerParams(
            dimension_semantics=("parallel",),
            vmem_limit_bytes=32 * 1024 * 1024,
        ),
    )(*flat_args)

    # Row-major (num_tiles, 1, tb) is exactly batch order; drop partial-tile
    # garbage rows and restore (B, 1).
    return out_tiles.reshape(num_tiles * tb)[:B].reshape(B, 1)


def init_params(key, dims):
    """Deterministic init mimicking torch.nn.Linear's U(-1/sqrt(in), 1/sqrt(in))."""
    params = []
    for d_in, d_out in zip(dims[:-1], dims[1:]):
        kw, kb, key = jax.random.split(key, 3)
        bound = 1.0 / jnp.sqrt(jnp.float32(d_in))
        w = jax.random.uniform(kw, (d_in, d_out), jnp.float32, -bound, bound)
        b = jax.random.uniform(kb, (1, d_out), jnp.float32, -bound, bound)
        params.append((w, b))
    return params


if __name__ == "__main__":
    # Small, module-consistent shapes: batch of 2 graphs, ml=8 nodes, nf=4 feats.
    # TODO(synk): torch_geometric Data unbatching (to_data_list / edge_index /
    # batch) is host-side glue; we assume a dense (B, ML, NF) feature tensor.
    B, ML, NF = 2, 8, 4
    OUT1, OUT2, OUT3, OUT4 = 548, 36, 500, 115

    key = jax.random.PRNGKey(0)
    kx, kp = jax.random.split(key)

    x = jax.random.normal(kx, (B, ML, NF), dtype=jnp.float32)
    params = init_params(kp, [ML * NF, OUT1, OUT2, OUT3, OUT4, 1])

    out = linear_mlp_forward(x, params)
    out = jax.block_until_ready(out)

    assert out.shape == (B, 1), out.shape
    assert out.dtype == jnp.float32, out.dtype

    # Pure-JAX f32 reference (same math, no Pallas, no padding).
    h = x.reshape(B, -1)
    for i, (w, b) in enumerate(params):
        h = h @ w + b
        if i < len(params) - 1:
            h = jnp.maximum(h, 0.0)
    # bf16 weights/activations in the kernel -> loosened tolerance.
    assert jnp.allclose(out, h, atol=5e-2, rtol=5e-2), (out, h)

    print("KERNEL_OK")
</pallas_src>

<mosaic_0001>
module attributes {stable_mosaic.version = 11 : i64} {
  func.func @_mlp_kernel(%arg0: i32, %arg1: memref<2x32xf32, #tpu.memory_space<vmem>>, %arg2: memref<32x640xbf16, #tpu.memory_space<vmem>>, %arg3: memref<1x640xf32, #tpu.memory_space<vmem>>, %arg4: memref<640x128xbf16, #tpu.memory_space<vmem>>, %arg5: memref<1x128xf32, #tpu.memory_space<vmem>>, %arg6: memref<128x512xbf16, #tpu.memory_space<vmem>>, %arg7: memref<1x512xf32, #tpu.memory_space<vmem>>, %arg8: memref<512x128xbf16, #tpu.memory_space<vmem>>, %arg9: memref<1x128xf32, #tpu.memory_space<vmem>>, %arg10: memref<1x128xbf16, #tpu.memory_space<vmem>>, %arg11: memref<1x1xf32, #tpu.memory_space<vmem>>, %arg12: memref<1x1x2xf32, #tpu.memory_space<vmem>>) attributes {dimension_semantics = [#tpu.dimension_semantics<parallel>], iteration_bounds = array<i64: 1>, scalar_prefetch = 0 : i64, scratch_operands = 0 : i64, tpu.core_type = #tpu.core_type<tc>, window_params = [{transform_indices = @transform_0, window_bounds = array<i64: 2, 32>}, {pipeline_mode = #tpu.pipeline_mode<synchronous>, transform_indices = @transform_1, window_bounds = array<i64: 32, 640>}, {pipeline_mode = #tpu.pipeline_mode<synchronous>, transform_indices = @transform_2, window_bounds = array<i64: 1, 640>}, {pipeline_mode = #tpu.pipeline_mode<synchronous>, transform_indices = @transform_3, window_bounds = array<i64: 640, 128>}, {pipeline_mode = #tpu.pipeline_mode<synchronous>, transform_indices = @transform_4, window_bounds = array<i64: 1, 128>}, {pipeline_mode = #tpu.pipeline_mode<synchronous>, transform_indices = @transform_5, window_bounds = array<i64: 128, 512>}, {pipeline_mode = #tpu.pipeline_mode<synchronous>, transform_indices = @transform_6, window_bounds = array<i64: 1, 512>}, {pipeline_mode = #tpu.pipeline_mode<synchronous>, transform_indices = @transform_7, window_bounds = array<i64: 512, 128>}, {pipeline_mode = #tpu.pipeline_mode<synchronous>, transform_indices = @transform_8, window_bounds = array<i64: 1, 128>}, {pipeline_mode = #tpu.pipeline_mode<synchronous>, transform_indices = @transform_9, window_bounds = array<i64: 1, 128>}, {pipeline_mode = #tpu.pipeline_mode<synchronous>, transform_indices = @transform_10, window_bounds = array<i64: 1, 1>}, {transform_indices = @transform_11, window_bounds = array<i64: 1, 1, 2>}]} {
    %c0 = arith.constant 0 : index
    %c0_0 = arith.constant 0 : index
    %0 = vector.load %arg1[%c0, %c0_0] : memref<2x32xf32, #tpu.memory_space<vmem>>, vector<2x32xf32>
    %1 = arith.truncf %0 : vector<2x32xf32> to vector<2x32xbf16>
    %c0_1 = arith.constant 0 : index
    %c0_2 = arith.constant 0 : index
    %2 = vector.load %arg2[%c0_1, %c0_2] : memref<32x640xbf16, #tpu.memory_space<vmem>>, vector<32x640xbf16>
    %cst = arith.constant dense<0.000000e+00> : vector<2x640xf32>
    %3 = tpu.matmul %1, %2, %cst {dimension_numbers = #tpu.dot_dimension_numbers<[1], [0], [0], [1], [0, 0, 1, 1], [], []>} : vector<2x32xbf16>, vector<32x640xbf16>, vector<2x640xf32> -> vector<2x640xf32>
    %c0_3 = arith.constant 0 : index
    %c0_4 = arith.constant 0 : index
    %4 = vector.load %arg3[%c0_3, %c0_4] : memref<1x640xf32, #tpu.memory_space<vmem>>, vector<1x640xf32>
    %5 = vector.broadcast %4 : vector<1x640xf32> to vector<2x640xf32>
    %6 = arith.addf %3, %5 : vector<2x640xf32>
    %cst_5 = arith.constant 0.000000e+00 : f32
    %7 = vector.broadcast %cst_5 : f32 to vector<2x640xf32>
    %8 = arith.maximumf %6, %7 : vector<2x640xf32>
    %9 = arith.truncf %8 : vector<2x640xf32> to vector<2x640xbf16>
    %c0_6 = arith.constant 0 : index
    %c0_7 = arith.constant 0 : index
    %10 = vector.load %arg4[%c0_6, %c0_7] : memref<640x128xbf16, #tpu.memory_space<vmem>>, vector<640x128xbf16>
    %cst_8 = arith.constant dense<0.000000e+00> : vector<2x128xf32>
    %11 = tpu.matmul %9, %10, %cst_8 {dimension_numbers = #tpu.dot_dimension_numbers<[1], [0], [0], [1], [0, 0, 1, 1], [], []>} : vector<2x640xbf16>, vector<640x128xbf16>, vector<2x128xf32> -> vector<2x128xf32>
    %c0_9 = arith.constant 0 : index
    %c0_10 = arith.constant 0 : index
    %12 = vector.load %arg5[%c0_9, %c0_10] : memref<1x128xf32, #tpu.memory_space<vmem>>, vector<1x128xf32>
    %13 = vector.broadcast %12 : vector<1x128xf32> to vector<2x128xf32>
    %14 = arith.addf %11, %13 : vector<2x128xf32>
    %cst_11 = arith.constant 0.000000e+00 : f32
    %15 = vector.broadcast %cst_11 : f32 to vector<2x128xf32>
    %16 = arith.maximumf %14, %15 : vector<2x128xf32>
    %17 = arith.truncf %16 : vector<2x128xf32> to vector<2x128xbf16>
    %c0_12 = arith.constant 0 : index
    %c0_13 = arith.constant 0 : index
    %18 = vector.load %arg6[%c0_12, %c0_13] : memref<128x512xbf16, #tpu.memory_space<vmem>>, vector<128x512xbf16>
    %cst_14 = arith.constant dense<0.000000e+00> : vector<2x512xf32>
    %19 = tpu.matmul %17, %18, %cst_14 {dimension_numbers = #tpu.dot_dimension_numbers<[1], [0], [0], [1], [0, 0, 1, 1], [], []>} : vector<2x128xbf16>, vector<128x512xbf16>, vector<2x512xf32> -> vector<2x512xf32>
    %c0_15 = arith.constant 0 : index
    %c0_16 = arith.constant 0 : index
    %20 = vector.load %arg7[%c0_15, %c0_16] : memref<1x512xf32, #tpu.memory_space<vmem>>, vector<1x512xf32>
    %21 = vector.broadcast %20 : vector<1x512xf32> to vector<2x512xf32>
    %22 = arith.addf %19, %21 : vector<2x512xf32>
    %cst_17 = arith.constant 0.000000e+00 : f32
    %23 = vector.broadcast %cst_17 : f32 to vector<2x512xf32>
    %24 = arith.maximumf %22, %23 : vector<2x512xf32>
    %25 = arith.truncf %24 : vector<2x512xf32> to vector<2x512xbf16>
    %c0_18 = arith.constant 0 : index
    %c0_19 = arith.constant 0 : index
    %26 = vector.load %arg8[%c0_18, %c0_19] : memref<512x128xbf16, #tpu.memory_space<vmem>>, vector<512x128xbf16>
    %cst_20 = arith.constant dense<0.000000e+00> : vector<2x128xf32>
    %27 = tpu.matmul %25, %26, %cst_20 {dimension_numbers = #tpu.dot_dimension_numbers<[1], [0], [0], [1], [0, 0, 1, 1], [], []>} : vector<2x512xbf16>, vector<512x128xbf16>, vector<2x128xf32> -> vector<2x128xf32>
    %c0_21 = arith.constant 0 : index
    %c0_22 = arith.constant 0 : index
    %28 = vector.load %arg9[%c0_21, %c0_22] : memref<1x128xf32, #tpu.memory_space<vmem>>, vector<1x128xf32>
    %29 = vector.broadcast %28 : vector<1x128xf32> to vector<2x128xf32>
    %30 = arith.addf %27, %29 : vector<2x128xf32>
    %cst_23 = arith.constant 0.000000e+00 : f32
    %31 = vector.broadcast %cst_23 : f32 to vector<2x128xf32>
    %32 = arith.maximumf %30, %31 : vector<2x128xf32>
    %33 = arith.truncf %32 : vector<2x128xf32> to vector<2x128xbf16>
    %c0_24 = arith.constant 0 : index
    %c0_25 = arith.constant 0 : index
    %34 = vector.load %arg10[%c0_24, %c0_25] : memref<1x128xbf16, #tpu.memory_space<vmem>>, vector<1x128xbf16>
    %cst_26 = arith.constant dense<0.000000e+00> : vector<1x2xf32>
    %35 = tpu.matmul %34, %33, %cst_26 {dimension_numbers = #tpu.dot_dimension_numbers<[1], [1], [0], [0], [0, 0, 1, 0], [], []>} : vector<1x128xbf16>, vector<2x128xbf16>, vector<1x2xf32> -> vector<1x2xf32>
    %c0_27 = arith.constant 0 : index
    %c0_28 = arith.constant 0 : index
    %36 = vector.load %arg11[%c0_27, %c0_28] : memref<1x1xf32, #tpu.memory_space<vmem>>, vector<1x1xf32>
    %37 = vector.broadcast %36 : vector<1x1xf32> to vector<1x2xf32>
    %38 = arith.addf %35, %37 : vector<1x2xf32>
    %c0_29 = arith.constant 0 : index
    %c0_30 = arith.constant 0 : index
    %c0_31 = arith.constant 0 : index
    %39 = vector.load %arg12[%c0_29, %c0_30, %c0_31] : memref<1x1x2xf32, #tpu.memory_space<vmem>>, vector<1x1x2xf32>
    %40 = vector.shape_cast %39 : vector<1x1x2xf32> to vector<1x2xf32>
    %41 = vector.shape_cast %38 : vector<1x2xf32> to vector<1x1x2xf32>
    tpu.vector_store %arg12[%c0_29, %c0_30, %c0_31], %41 {strides = array<i32>} : memref<1x1x2xf32, #tpu.memory_space<vmem>>, vector<1x1x2xf32>,
    return
  }
  func.func @transform_0(%arg0: i32) -> (i32, i32) {
    %c0_i32 = arith.constant 0 : i32
    %c0_i32_0 = arith.constant 0 : i32
    return %arg0, %c0_i32 : i32, i32
  }
  func.func @transform_1(%arg0: i32) -> (i32, i32) {
    %c0_i32 = arith.constant 0 : i32
    %c0_i32_0 = arith.constant 0 : i32
    %c0_i32_1 = arith.constant 0 : i32
    return %c0_i32, %c0_i32_0 : i32, i32
  }
  func.func @transform_2(%arg0: i32) -> (i32, i32) {
    %c0_i32 = arith.constant 0 : i32
    %c0_i32_0 = arith.constant 0 : i32
    %c0_i32_1 = arith.constant 0 : i32
    return %c0_i32, %c0_i32_0 : i32, i32
  }
  func.func @transform_3(%arg0: i32) -> (i32, i32) {
    %c0_i32 = arith.constant 0 : i32
    %c0_i32_0 = arith.constant 0 : i32
    %c0_i32_1 = arith.constant 0 : i32
    return %c0_i32, %c0_i32_0 : i32, i32
  }
  func.func @transform_4(%arg0: i32) -> (i32, i32) {
    %c0_i32 = arith.constant 0 : i32
    %c0_i32_0 = arith.constant 0 : i32
    %c0_i32_1 = arith.constant 0 : i32
    return %c0_i32, %c0_i32_0 : i32, i32
  }
  func.func @transform_5(%arg0: i32) -> (i32, i32) {
    %c0_i32 = arith.constant 0 : i32
    %c0_i32_0 = arith.constant 0 : i32
    %c0_i32_1 = arith.constant 0 : i32
    return %c0_i32, %c0_i32_0 : i32, i32
  }
  func.func @transform_6(%arg0: i32) -> (i32, i32) {
    %c0_i32 = arith.constant 0 : i32
    %c0_i32_0 = arith.constant 0 : i32
    %c0_i32_1 = arith.constant 0 : i32
    return %c0_i32, %c0_i32_0 : i32, i32
  }
  func.func @transform_7(%arg0: i32) -> (i32, i32) {
    %c0_i32 = arith.constant 0 : i32
    %c0_i32_0 = arith.constant 0 : i32
    %c0_i32_1 = arith.constant 0 : i32
    return %c0_i32, %c0_i32_0 : i32, i32
  }
  func.func @transform_8(%arg0: i32) -> (i32, i32) {
    %c0_i32 = arith.constant 0 : i32
    %c0_i32_0 = arith.constant 0 : i32
    %c0_i32_1 = arith.constant 0 : i32
    return %c0_i32, %c0_i32_0 : i32, i32
  }
  func.func @transform_9(%arg0: i32) -> (i32, i32) {
    %c0_i32 = arith.constant 0 : i32
    %c0_i32_0 = arith.constant 0 : i32
    %c0_i32_1 = arith.constant 0 : i32
    return %c0_i32, %c0_i32_0 : i32, i32
  }
  func.func @transform_10(%arg0: i32) -> (i32, i32) {
    %c0_i32 = arith.constant 0 : i32
    %c0_i32_0 = arith.constant 0 : i32
    %c0_i32_1 = arith.constant 0 : i32
    return %c0_i32, %c0_i32_0 : i32, i32
  }
  func.func @transform_11(%arg0: i32) -> (i32, i32, i32) {
    %c0_i32 = arith.constant 0 : i32
    %c0_i32_0 = arith.constant 0 : i32
    %c0_i32_1 = arith.constant 0 : i32
    return %arg0, %c0_i32, %c0_i32_0 : i32, i32, i32
  }
}

</mosaic_0001>

<llo_original>
// kernel: tpu_custom_call.1
$region0: #{tpu_custom_call.1}
  #allocation0 [shape = 'u32[]', space=smem, size = 0x4, offset = 0x4, fixed_abs, tag = 'smem constant byte address 0x4 - core index']
  #allocation1 [shape = 'u32[144,128]{1,0:T(1,128)}', space=vmem, size = 0x12000, scoped, tag = 'internal scratch']
  #allocation2 [shape = 'f32[1,1]{1,0:T(1,128)S(1)}', space=vmem, size = 0x200, scoped, tag = 'scoped memory for tpu_custom_call.1']
  %s0 = inlined_call_operand.vmem [shape: f32[2,32], index: 0, kind: input, shape index: {}]
  %s1 = inlined_call_operand.hbm [shape: bf16[32,640], index: 1, kind: input, shape index: {}]
  %s2 = inlined_call_operand.vmem [shape: f32[1,640], index: 2, kind: input, shape index: {}]
  %s3 = inlined_call_operand.hbm [shape: bf16[640,128], index: 3, kind: input, shape index: {}]
  %s4 = inlined_call_operand.vmem [shape: f32[1,128], index: 4, kind: input, shape index: {}]
  %s5 = inlined_call_operand.hbm [shape: bf16[128,512], index: 5, kind: input, shape index: {}]
  %s6 = inlined_call_operand.vmem [shape: f32[1,512], index: 6, kind: input, shape index: {}]
  %s7 = inlined_call_operand.hbm [shape: bf16[512,128], index: 7, kind: input, shape index: {}]
  %s8 = inlined_call_operand.vmem [shape: f32[1,128], index: 8, kind: input, shape index: {}]
  %s9 = inlined_call_operand.vmem [shape: bf16[1,128], index: 9, kind: input, shape index: {}]
  %s10 = inlined_call_operand.<no memory space> [shape: f32[1,1], index: 10, kind: input, shape index: {}]
  %s11 = inlined_call_operand.hbm [shape: f32[1,1,2], index: 11, kind: output, shape index: {}]
  %s12 = sld [smem:[#allocation0]]
  $region70: #{tpu_custom_call.1} parent=0
    _
  %s14 = ssub.s32 1, %s12
  %s15 = scalar_select 0, %s14, %s12
  %v16 = vstv %s10
  %17 = vst [vmem:[#allocation2] sm:$0x1] %v16
  $region1: #{tpu_custom_call.1} parent=0
    #allocation3 [shape = 'u8[40960]{0}', space=vmem, size = 0xa000, scoped, tag = 'input window, operand 1, single buffered']
    #allocation4 [shape = 's32[1]{0}', space=sflag, size = 0x4, scoped, tag = 'scoped memory for tpu_custom_call.1']
    #allocation5 [shape = 's32[1]{0}', space=sflag, size = 0x4, scoped, tag = 'scoped memory for tpu_custom_call.1']
    #allocation6 [shape = 'u8[163840]{0}', space=vmem, size = 0x28000, scoped, tag = 'input window, operand 3, single buffered']
    #allocation7 [shape = 's32[1]{0}', space=sflag, size = 0x4, scoped, tag = 'scoped memory for tpu_custom_call.1']
    #allocation8 [shape = 'u8[131072]{0}', space=vmem, size = 0x20000, scoped, tag = 'input window, operand 5, single buffered']
    #allocation9 [shape = 'u8[131072]{0}', space=vmem, size = 0x20000, scoped, tag = 'input window, operand 7, single buffered']
    #allocation10 [shape = 's32[1]{0}', space=sflag, size = 0x4, scoped, tag = 'scoped memory for tpu_custom_call.1']
    #allocation11 [shape = 'u8[512]{0}', space=vmem, size = 0x400, scoped, tag = 'output window, operand 0, single buffered']
    %18 = vsyncpa [#allocation4], 0
    %19 = vsyncpa [#allocation7], 0
    %20 = vsyncpa [#allocation10], 0
    %21 = vsyncpa [#allocation5], 0
    // Predicated region
    $region2: #{tpu_custom_call.1} parent=1 // pred_check
      _
    $region3: #{tpu_custom_call.1} parent=1 // pred_check_branch
      %23 = sbr.rel (0) target = $region5
    $region4: #{tpu_custom_call.1} parent=1 // pred_region
      _
    $region5: #{tpu_custom_call.1} parent=1 // pred_fallthru
      _
    // Predicated region
    $region6: #{tpu_custom_call.1} parent=1 // pred_check
      _
    $region7: #{tpu_custom_call.1} parent=1 // pred_check_branch
      %25 = sbr.rel (0) target = $region9
    $region8: #{tpu_custom_call.1} parent=1 // pred_region
      %s27 = ssub.s32 1280, 1280
      %28 = vsyncadd [#allocation4], %s27
      %s29 = sshll.u32 [#allocation3], 4
      %s30 = int_to_ptr.vmem [resolvable:$true] %s29
      %35 = dma.hbm_to_vmem [thread:$0]  %s1, 1280, %s30, [#allocation4], 320, 320, 20
    $region9: #{tpu_custom_call.1} parent=1 // pred_fallthru
      _
    // Predicated region
    $region10: #{tpu_custom_call.1} parent=1 // pred_check
      _
    $region11: #{tpu_custom_call.1} parent=1 // pred_check_branch
      %37 = sbr.rel (0) target = $region13
    $region12: #{tpu_custom_call.1} parent=1 // pred_region
      _
    $region13: #{tpu_custom_call.1} parent=1 // pred_fallthru
      _
    // Predicated region
    $region14: #{tpu_custom_call.1} parent=1 // pred_check
      _
    $region15: #{tpu_custom_call.1} parent=1 // pred_check_branch
      %39 = sbr.rel (0) target = $region17
    $region16: #{tpu_custom_call.1} parent=1 // pred_region
      %s41 = ssub.s32 5120, 5120
      %42 = vsyncadd [#allocation7], %s41
      %s43 = sshll.u32 [#allocation6], 4
      %s44 = int_to_ptr.vmem [resolvable:$true] %s43
      %49 = dma.hbm_to_vmem [thread:$0]  %s3, 5120, %s44, [#allocation7], 64, 64, 4
    $region17: #{tpu_custom_call.1} parent=1 // pred_fallthru
      _
    // Predicated region
    $region18: #{tpu_custom_call.1} parent=1 // pred_check
      _
    $region19: #{tpu_custom_call.1} parent=1 // pred_check_branch
      %51 = sbr.rel (0) target = $region21
    $region20: #{tpu_custom_call.1} parent=1 // pred_region
      _
    $region21: #{tpu_custom_call.1} parent=1 // pred_fallthru
      _
    // Predicated region
    $region22: #{tpu_custom_call.1} parent=1 // pred_check
      _
    $region23: #{tpu_custom_call.1} parent=1 // pred_check_branch
      %53 = sbr.rel (0) target = $region25
    $region24: #{tpu_custom_call.1} parent=1 // pred_region
      %s55 = ssub.s32 4096, 4096
      %56 = vsyncadd [#allocation7], %s55
      %s57 = sshll.u32 [#allocation8], 4
      %s58 = int_to_ptr.vmem [resolvable:$true] %s57
      %63 = dma.hbm_to_vmem [thread:$0]  %s5, 4096, %s58, [#allocation7], 256, 256, 16
    $region25: #{tpu_custom_call.1} parent=1 // pred_fallthru
      _
    // Predicated region
    $region26: #{tpu_custom_call.1} parent=1 // pred_check
      _
    $region27: #{tpu_custom_call.1} parent=1 // pred_check_branch
      %65 = sbr.rel (0) target = $region29
    $region28: #{tpu_custom_call.1} parent=1 // pred_region
      _
    $region29: #{tpu_custom_call.1} parent=1 // pred_fallthru
      _
    // Predicated region
    $region30: #{tpu_custom_call.1} parent=1 // pred_check
      _
    $region31: #{tpu_custom_call.1} parent=1 // pred_check_branch
      %67 = sbr.rel (0) target = $region33
    $region32: #{tpu_custom_call.1} parent=1 // pred_region
      %s69 = ssub.s32 4096, 4096
      %70 = vsyncadd [#allocation10], %s69
      %s71 = sshll.u32 [#allocation9], 4
      %s72 = int_to_ptr.vmem [resolvable:$true] %s71
      %77 = dma.hbm_to_vmem [thread:$0]  %s7, 4096, %s72, [#allocation10], 64, 64, 4
    $region33: #{tpu_custom_call.1} parent=1 // pred_fallthru
      _
    // Predicated region
    $region34: #{tpu_custom_call.1} parent=1 // pred_check
      _
    $region35: #{tpu_custom_call.1} parent=1 // pred_check_branch
      %79 = sbr.rel (0) target = $region37
    $region36: #{tpu_custom_call.1} parent=1 // pred_region
      _
    $region37: #{tpu_custom_call.1} parent=1 // pred_fallthru
      _
    // Predicated region
    $region38: #{tpu_custom_call.1} parent=1 // pred_check
      _
    $region39: #{tpu_custom_call.1} parent=1 // pred_check_branch
      %81 = sbr.rel (0) target = $region41
    $region40: #{tpu_custom_call.1} parent=1 // pred_region
      _
    $region41: #{tpu_custom_call.1} parent=1 // pred_fallthru
      _
    // Predicated region
    $region42: #{tpu_custom_call.1} parent=1 // pred_check
      _
    $region43: #{tpu_custom_call.1} parent=1 // pred_check_branch
      %83 = sbr.rel (0) target = $region45
    $region44: #{tpu_custom_call.1} parent=1 // pred_region
      _
    $region45: #{tpu_custom_call.1} parent=1 // pred_fallthru
      _
    // Predicated region
    $region46: #{tpu_custom_call.1} parent=1 // pred_check
      _
    $region47: #{tpu_custom_call.1} parent=1 // pred_check_branch
      %85 = sbr.rel (0) target = $region49
    $region48: #{tpu_custom_call.1} parent=1 // pred_region
      %86 = dma.done [#allocation4], 1280
    $region49: #{tpu_custom_call.1} parent=1 // pred_fallthru
      _
    // Predicated region
    $region50: #{tpu_custom_call.1} parent=1 // pred_check
      _
    $region51: #{tpu_custom_call.1} parent=1 // pred_check_branch
      %88 = sbr.rel (0) target = $region53
    $region52: #{tpu_custom_call.1} parent=1 // pred_region
      %89 = dma.done [#allocation7], 5120
    $region53: #{tpu_custom_call.1} parent=1 // pred_fallthru
      _
    // Predicated region
    $region54: #{tpu_custom_call.1} parent=1 // pred_check
      _
    $region55: #{tpu_custom_call.1} parent=1 // pred_check_branch
      %91 = sbr.rel (0) target = $region57
    $region56: #{tpu_custom_call.1} parent=1 // pred_region
      %92 = dma.done [#allocation7], 4096
    $region57: #{tpu_custom_call.1} parent=1 // pred_fallthru
      _
    // Predicated region
    $region58: #{tpu_custom_call.1} parent=1 // pred_check
      _
    $region59: #{tpu_custom_call.1} parent=1 // pred_check_branch
      %94 = sbr.rel (0) target = $region61
    $region60: #{tpu_custom_call.1} parent=1 // pred_region
      %95 = dma.done [#allocation10], 4096
    $region61: #{tpu_custom_call.1} parent=1 // pred_fallthru
      _
    %v97 = vld [vmem:[%s0] sm:$0x3]
    %v98 = vpack.c.bf16 %v97, %v97
    %v99 = vld [vmem:[#allocation3] sm:$0xff]
    %v100 = vld [vmem:[#allocation3 + $0x8] sm:$0xff]
    %v101 = vld [vmem:[#allocation3 + $0x10] sm:$0xf]
    %v102 = vld [vmem:[#allocation3 + $0x14] sm:$0xff]
    %v103 = vld [vmem:[#allocation3 + $0x1c] sm:$0xff]
    %v104 = vld [vmem:[#allocation3 + $0x24] sm:$0xf]
    %v105 = vld [vmem:[#allocation3 + $0x28] sm:$0xff]
    %v106 = vld [vmem:[#allocation3 + $0x30] sm:$0xff]
    %v107 = vld [vmem:[#allocation3 + $0x38] sm:$0xf]
    %v108 = vld [vmem:[#allocation3 + $0x3c] sm:$0xff]
    %v109 = vld [vmem:[#allocation3 + $0x44] sm:$0xff]
    %v110 = vld [vmem:[#allocation3 + $0x4c] sm:$0xf]
    %v111 = vld [vmem:[%s2] sm:$0x1f]
    %v113 = vlaneseq
    %v114 = vshrl.u32 %v113, 7
    %v115 = vsub.s32 0, %v114
    %v116 = vrot.slane %v111, %v115
    %v117 = vlaneseq
    %v118 = vshrl.u32 %v117, 7
    %v119 = vsub.s32 1, %v118
    %v120 = vrot.slane %v111, %v119
    %v121 = vlaneseq
    %v122 = vshrl.u32 %v121, 7
    %v123 = vsub.s32 2, %v122
    %v124 = vrot.slane %v111, %v123
    %v125 = vlaneseq
    %v126 = vshrl.u32 %v125, 7
    %v127 = vsub.s32 3, %v126
    %v128 = vrot.slane %v111, %v127
    %v129 = vlaneseq
    %v130 = vshrl.u32 %v129, 7
    %v131 = vsub.s32 4, %v130
    %v132 = vrot.slane %v111, %v131
    %v150 = vunpack.c.l.b16 %v99
    %v151 = vunpack.c.h.b16 %v99
    %v152 = vunpack.c.l.b16 %v100
    %v153 = vunpack.c.h.b16 %v100
    %v154 = vunpack.c.l.b16 %v101
    %v155 = vunpack.c.l.b16 %v102
    %v156 = vunpack.c.h.b16 %v102
    %v157 = vunpack.c.l.b16 %v103
    %v158 = vunpack.c.h.b16 %v103
    %v159 = vunpack.c.l.b16 %v104
    %v160 = vunpack.c.l.b16 %v105
    %v161 = vunpack.c.h.b16 %v105
    %v162 = vunpack.c.l.b16 %v106
    %v163 = vunpack.c.h.b16 %v106
    %v164 = vunpack.c.l.b16 %v107
    %v165 = vunpack.c.l.b16 %v108
    %v166 = vunpack.c.h.b16 %v108
    %v167 = vunpack.c.l.b16 %v109
    %v168 = vunpack.c.h.b16 %v109
    %v169 = vunpack.c.l.b16 %v110
    %v170 = vpack.c.b16 %v155, %v150
    %v171 = vpack.c.b16 %v156, %v151
    %v172 = vpack.c.b16 %v157, %v152
    %v173 = vpack.c.b16 %v158, %v153
    %v174 = vpack.c.b16 %v159, %v154
    %v175 = vpack.c.b16 %v165, %v160
    %v176 = vpack.c.b16 %v166, %v161
    %v177 = vpack.c.b16 %v167, %v162
    %v178 = vpack.c.b16 %v168, %v163
    %v179 = vpack.c.b16 %v169, %v164
    %vm190 = vcmask 261120
    %v192 = vsel %vm190, %v98, 0
    %194 = vmatprep.subr.bf16.mxu0 %v171
    %195 = vmatpush1.bf16.msra.mxu0 %v170
    %196 = vmatprep.subr.bf16.mxu0 %v176
    %197 = vmatpush1.bf16.msra.mxu0 %v175
    %198 = vmatprep.subr.bf16.mxu0 0
    %199 = vmatpush1.bf16.msra.mxu0 0
    %200 = vmatprep.subr.bf16.mxu0 0
    %201 = vmatpush1.bf16.msra.mxu0 0
    %202 = vmatprep.subr.bf16.mxu0 0
    %203 = vmatpush1.bf16.msra.mxu0 0
    %204 = vmatprep.subr.bf16.mxu0 0
    %205 = vmatpush1.bf16.msra.mxu0 0
    %206 = vmatprep.subr.bf16.mxu0 0
    %207 = vmatpush1.bf16.msra.mxu0 0
    %208 = vmatprep.subr.bf16.mxu0 0
    %209 = vmatpush1.bf16.msra.mxu0 0
    %210 = vmatprep.subr.bf16.mxu0 0
    %211 = vmatpush1.bf16.msra.mxu0 0
    %212 = vmatprep.subr.bf16.mxu0 0
    %213 = vmatpush1.bf16.msra.mxu0 0
    %214 = vmatprep.subr.bf16.mxu0 0
    %215 = vmatpush1.bf16.msra.mxu0 0
    %216 = vmatprep.subr.bf16.mxu0 0
    %217 = vmatpush1.bf16.msra.mxu0 0
    %218 = vmatprep.subr.bf16.mxu0 0
    %219 = vmatpush1.bf16.msra.mxu0 0
    %220 = vmatprep.subr.bf16.mxu0 0
    %221 = vmatpush1.bf16.msra.mxu0 0
    %222 = vmatprep.subr.bf16.mxu0 0
    %223 = vmatpush1.bf16.msra.mxu0 0
    %224 = vmatprep.subr.bf16.mxu0 0
    %225 = vmatpush1.bf16.msra.mxu0 0
    %226 = vmatprep.mubr.bf16.mxu0 0
    %227 = vmatmul.mubr.bf16.gmra.mrb[0].mxu0 %v192
    %v228 = vpop.f32.mrb[0].mxu0
    %v229 = vadd.f32 %v116, %v228
    %v230 = vpop.f32.mrb[0].mxu0
    %v231 = vadd.f32 %v120, %v230
    %v232 = vpop.f32.mrb[0].mxu0
    %v233 = vpop.f32.mrb[0].mxu0
    %234 = vdwg.mxu0
    %235 = vmatprep.subr.bf16.mxu0 %v173
    %236 = vmatpush1.bf16.msra.mxu0 %v172
    %237 = vmatprep.subr.bf16.mxu0 %v178
    %238 = vmatpush1.bf16.msra.mxu0 %v177
    %239 = vmatprep.subr.bf16.mxu0 0
    %240 = vmatpush1.bf16.msra.mxu0 0
    %241 = vmatprep.subr.bf16.mxu0 0
    %242 = vmatpush1.bf16.msra.mxu0 0
    %243 = vmatprep.subr.bf16.mxu0 0
    %244 = vmatpush1.bf16.msra.mxu0 0
    %245 = vmatprep.subr.bf16.mxu0 0
    %246 = vmatpush1.bf16.msra.mxu0 0
    %247 = vmatprep.subr.bf16.mxu0 0
    %248 = vmatpush1.bf16.msra.mxu0 0
    %249 = vmatprep.subr.bf16.mxu0 0
    %250 = vmatpush1.bf16.msra.mxu0 0
    %251 = vmatprep.subr.bf16.mxu0 0
    %252 = vmatpush1.bf16.msra.mxu0 0
    %253 = vmatprep.subr.bf16.mxu0 0
    %254 = vmatpush1.bf16.msra.mxu0 0
    %255 = vmatprep.subr.bf16.mxu0 0
    %256 = vmatpush1.bf16.msra.mxu0 0
    %257 = vmatprep.subr.bf16.mxu0 0
    %258 = vmatpush1.bf16.msra.mxu0 0
    %259 = vmatprep.subr.bf16.mxu0 0
    %260 = vmatpush1.bf16.msra.mxu0 0
    %261 = vmatprep.subr.bf16.mxu0 0
    %262 = vmatpush1.bf16.msra.mxu0 0
    %263 = vmatprep.subr.bf16.mxu0 0
    %264 = vmatpush1.bf16.msra.mxu0 0
    %265 = vmatprep.subr.bf16.mxu0 0
    %266 = vmatpush1.bf16.msra.mxu0 0
    %267 = vmatprep.mubr.bf16.mxu0 0
    %268 = vmatmul.mubr.bf16.gmra.mrb[0].mxu0 %v192
    %v269 = vpop.f32.mrb[0].mxu0
    %v270 = vadd.f32 %v124, %v269
    %v271 = vpop.f32.mrb[0].mxu0
    %v272 = vadd.f32 %v128, %v271
    %v273 = vpop.f32.mrb[0].mxu0
    %v274 = vpop.f32.mrb[0].mxu0
    %275 = vdwg.mxu0
    %276 = vmatprep.subr.bf16.mxu0 0
    %277 = vmatpush1.bf16.msra.mxu0 %v174
    %278 = vmatprep.subr.bf16.mxu0 0
    %279 = vmatpush1.bf16.msra.mxu0 %v179
    %280 = vmatprep.subr.bf16.mxu0 0
    %281 = vmatpush1.bf16.msra.mxu0 0
    %282 = vmatprep.subr.bf16.mxu0 0
    %283 = vmatpush1.bf16.msra.mxu0 0
    %284 = vmatprep.subr.bf16.mxu0 0
    %285 = vmatpush1.bf16.msra.mxu0 0
    %286 = vmatprep.subr.bf16.mxu0 0
    %287 = vmatpush1.bf16.msra.mxu0 0
    %288 = vmatprep.subr.bf16.mxu0 0
    %289 = vmatpush1.bf16.msra.mxu0 0
    %290 = vmatprep.subr.bf16.mxu0 0
    %291 = vmatpush1.bf16.msra.mxu0 0
    %292 = vmatprep.subr.bf16.mxu0 0
    %293 = vmatpush1.bf16.msra.mxu0 0
    %294 = vmatprep.subr.bf16.mxu0 0
    %295 = vmatpush1.bf16.msra.mxu0 0
    %296 = vmatprep.subr.bf16.mxu0 0
    %297 = vmatpush1.bf16.msra.mxu0 0
    %298 = vmatprep.subr.bf16.mxu0 0
    %299 = vmatpush1.bf16.msra.mxu0 0
    %300 = vmatprep.subr.bf16.mxu0 0
    %301 = vmatpush1.bf16.msra.mxu0 0
    %302 = vmatprep.subr.bf16.mxu0 0
    %303 = vmatpush1.bf16.msra.mxu0 0
    %304 = vmatprep.subr.bf16.mxu0 0
    %305 = vmatpush1.bf16.msra.mxu0 0
    %306 = vmatprep.subr.bf16.mxu0 0
    %307 = vmatpush1.bf16.msra.mxu0 0
    %308 = vmatprep.mubr.bf16.mxu0 0
    %309 = vmatmul.mubr.bf16.gmra.mrb[0].mxu0 %v192
    %v310 = vpop.f32.mrb[0].mxu0
    %v311 = vadd.f32 %v132, %v310
    %v312 = vpop.f32.mrb[0].mxu0
    %v313 = vpop.f32.mrb[0].mxu0
    %v314 = vpop.f32.mrb[0].mxu0
    %315 = vdwg.mxu0
    %v316 = vmax.f32 %v229, 0.0
    %v317 = vmax.f32 %v231, 0.0
    %v318 = vmax.f32 %v270, 0.0
    %v319 = vmax.f32 %v272, 0.0
    %v320 = vmax.f32 %v311, 0.0
    %v321 = vpack.c.bf16 %v316, %v316
    %v322 = vpack.c.bf16 %v317, %v317
    %v323 = vpack.c.bf16 %v318, %v318
    %v324 = vpack.c.bf16 %v319, %v319
    %v325 = vpack.c.bf16 %v320, %v320
    %v326 = vld [vmem:[#allocation6] sm:$0xf]
    %v327 = vld [vmem:[#allocation6 + $0x4] sm:$0xf]
    %v328 = vld [vmem:[#allocation6 + $0x8] sm:$0xf]
    %v329 = vld [vmem:[#allocation6 + $0xc] sm:$0xf]
    %v330 = vld [vmem:[#allocation6 + $0x10] sm:$0xf]
    %v331 = vld [vmem:[#allocation6 + $0x14] sm:$0xf]
    %v332 = vld [vmem:[#allocation6 + $0x18] sm:$0xf]
    %v333 = vld [vmem:[#allocation6 + $0x1c] sm:$0xf]
    %v334 = vld [vmem:[#allocation6 + $0x20] sm:$0xf]
    %v335 = vld [vmem:[#allocation6 + $0x24] sm:$0xf]
    %v336 = vld [vmem:[#allocation6 + $0x28] sm:$0xf]
    %v337 = vld [vmem:[#allocation6 + $0x2c] sm:$0xf]
    %v338 = vld [vmem:[#allocation6 + $0x30] sm:$0xf]
    %v339 = vld [vmem:[#allocation6 + $0x34] sm:$0xf]
    %v340 = vld [vmem:[#allocation6 + $0x38] sm:$0xf]
    %v341 = vld [vmem:[#allocation6 + $0x3c] sm:$0xf]
    %v342 = vld [vmem:[#allocation6 + $0x40] sm:$0xf]
    %v343 = vld [vmem:[#allocation6 + $0x44] sm:$0xf]
    %v344 = vld [vmem:[#allocation6 + $0x48] sm:$0xf]
    %v345 = vld [vmem:[#allocation6 + $0x4c] sm:$0xf]
    %v346 = vld [vmem:[#allocation6 + $0x50] sm:$0xf]
    %v347 = vld [vmem:[#allocation6 + $0x54] sm:$0xf]
    %v348 = vld [vmem:[#allocation6 + $0x58] sm:$0xf]
    %v349 = vld [vmem:[#allocation6 + $0x5c] sm:$0xf]
    %v350 = vld [vmem:[#allocation6 + $0x60] sm:$0xf]
    %v351 = vld [vmem:[#allocation6 + $0x64] sm:$0xf]
    %v352 = vld [vmem:[#allocation6 + $0x68] sm:$0xf]
    %v353 = vld [vmem:[#allocation6 + $0x6c] sm:$0xf]
    %v354 = vld [vmem:[#allocation6 + $0x70] sm:$0xf]
    %v355 = vld [vmem:[#allocation6 + $0x74] sm:$0xf]
    %v356 = vld [vmem:[#allocation6 + $0x78] sm:$0xf]
    %v357 = vld [vmem:[#allocation6 + $0x7c] sm:$0xf]
    %v358 = vld [vmem:[#allocation6 + $0x80] sm:$0xf]
    %v359 = vld [vmem:[#allocation6 + $0x84] sm:$0xf]
    %v360 = vld [vmem:[#allocation6 + $0x88] sm:$0xf]
    %v361 = vld [vmem:[#allocation6 + $0x8c] sm:$0xf]
    %v362 = vld [vmem:[#allocation6 + $0x90] sm:$0xf]
    %v363 = vld [vmem:[#allocation6 + $0x94] sm:$0xf]
    %v364 = vld [vmem:[#allocation6 + $0x98] sm:$0xf]
    %v365 = vld [vmem:[#allocation6 + $0x9c] sm:$0xf]
    %v366 = vld [vmem:[#allocation6 + $0xa0] sm:$0xf]
    %v367 = vld [vmem:[#allocation6 + $0xa4] sm:$0xf]
    %v368 = vld [vmem:[#allocation6 + $0xa8] sm:$0xf]
    %v369 = vld [vmem:[#allocation6 + $0xac] sm:$0xf]
    %v370 = vld [vmem:[#allocation6 + $0xb0] sm:$0xf]
    %v371 = vld [vmem:[#allocation6 + $0xb4] sm:$0xf]
    %v372 = vld [vmem:[#allocation6 + $0xb8] sm:$0xf]
    %v373 = vld [vmem:[#allocation6 + $0xbc] sm:$0xf]
    %v374 = vld [vmem:[#allocation6 + $0xc0] sm:$0xf]
    %v375 = vld [vmem:[#allocation6 + $0xc4] sm:$0xf]
    %v376 = vld [vmem:[#allocation6 + $0xc8] sm:$0xf]
    %v377 = vld [vmem:[#allocation6 + $0xcc] sm:$0xf]
    %v378 = vld [vmem:[#allocation6 + $0xd0] sm:$0xf]
    %v379 = vld [vmem:[#allocation6 + $0xd4] sm:$0xf]
    %v380 = vld [vmem:[#allocation6 + $0xd8] sm:$0xf]
    %v381 = vld [vmem:[#allocation6 + $0xdc] sm:$0xf]
    %v382 = vld [vmem:[#allocation6 + $0xe0] sm:$0xf]
    %v383 = vld [vmem:[#allocation6 + $0xe4] sm:$0xf]
    %v384 = vld [vmem:[#allocation6 + $0xe8] sm:$0xf]
    %v385 = vld [vmem:[#allocation6 + $0xec] sm:$0xf]
    %v386 = vld [vmem:[#allocation6 + $0xf0] sm:$0xf]
    %v387 = vld [vmem:[#allocation6 + $0xf4] sm:$0xf]
    %v388 = vld [vmem:[#allocation6 + $0xf8] sm:$0xf]
    %v389 = vld [vmem:[#allocation6 + $0xfc] sm:$0xf]
    %v390 = vld [vmem:[#allocation6 + $0x100] sm:$0xf]
    %v391 = vld [vmem:[#allocation6 + $0x104] sm:$0xf]
    %v392 = vld [vmem:[#allocation6 + $0x108] sm:$0xf]
    %v393 = vld [vmem:[#allocation6 + $0x10c] sm:$0xf]
    %v394 = vld [vmem:[#allocation6 + $0x110] sm:$0xf]
    %v395 = vld [vmem:[#allocation6 + $0x114] sm:$0xf]
    %v396 = vld [vmem:[#allocation6 + $0x118] sm:$0xf]
    %v397 = vld [vmem:[#allocation6 + $0x11c] sm:$0xf]
    %v398 = vld [vmem:[#allocation6 + $0x120] sm:$0xf]
    %v399 = vld [vmem:[#allocation6 + $0x124] sm:$0xf]
    %v400 = vld [vmem:[#allocation6 + $0x128] sm:$0xf]
    %v401 = vld [vmem:[#allocation6 + $0x12c] sm:$0xf]
    %v402 = vld [vmem:[#allocation6 + $0x130] sm:$0xf]
    %v403 = vld [vmem:[#allocation6 + $0x134] sm:$0xf]
    %v404 = vld [vmem:[#allocation6 + $0x138] sm:$0xf]
    %v405 = vld [vmem:[#allocation6 + $0x13c] sm:$0xf]
    %v406 = vld [vmem:[%s4] sm:$0x1]
    %v408 = vlaneseq
    %v409 = vshrl.u32 %v408, 7
    %v410 = vsub.s32 0, %v409
    %v411 = vrot.slane %v406, %v410
    %v493 = vunpack.c.l.b16 %v326
    %v494 = vunpack.c.l.b16 %v327
    %v495 = vunpack.c.l.b16 %v328
    %v496 = vunpack.c.l.b16 %v329
    %v497 = vunpack.c.l.b16 %v330
    %v498 = vunpack.c.l.b16 %v331
    %v499 = vunpack.c.l.b16 %v332
    %v500 = vunpack.c.l.b16 %v333
    %v501 = vunpack.c.l.b16 %v334
    %v502 = vunpack.c.l.b16 %v335
    %v503 = vunpack.c.l.b16 %v336
    %v504 = vunpack.c.l.b16 %v337
    %v505 = vunpack.c.l.b16 %v338
    %v506 = vunpack.c.l.b16 %v339
    %v507 = vunpack.c.l.b16 %v340
    %v508 = vunpack.c.l.b16 %v341
    %v509 = vunpack.c.l.b16 %v342
    %v510 = vunpack.c.l.b16 %v343
    %v511 = vunpack.c.l.b16 %v344
    %v512 = vunpack.c.l.b16 %v345
    %v513 = vunpack.c.l.b16 %v346
    %v514 = vunpack.c.l.b16 %v347
    %v515 = vunpack.c.l.b16 %v348
    %v516 = vunpack.c.l.b16 %v349
    %v517 = vunpack.c.l.b16 %v350
    %v518 = vunpack.c.l.b16 %v351
    %v519 = vunpack.c.l.b16 %v352
    %v520 = vunpack.c.l.b16 %v353
    %v521 = vunpack.c.l.b16 %v354
    %v522 = vunpack.c.l.b16 %v355
    %v523 = vunpack.c.l.b16 %v356
    %v524 = vunpack.c.l.b16 %v357
    %v525 = vunpack.c.l.b16 %v358
    %v526 = vunpack.c.l.b16 %v359
    %v527 = vunpack.c.l.b16 %v360
    %v528 = vunpack.c.l.b16 %v361
    %v529 = vunpack.c.l.b16 %v362
    %v530 = vunpack.c.l.b16 %v363
    %v531 = vunpack.c.l.b16 %v364
    %v532 = vunpack.c.l.b16 %v365
    %v533 = vunpack.c.l.b16 %v366
    %v534 = vunpack.c.l.b16 %v367
    %v535 = vunpack.c.l.b16 %v368
    %v536 = vunpack.c.l.b16 %v369
    %v537 = vunpack.c.l.b16 %v370
    %v538 = vunpack.c.l.b16 %v371
    %v539 = vunpack.c.l.b16 %v372
    %v540 = vunpack.c.l.b16 %v373
    %v541 = vunpack.c.l.b16 %v374
    %v542 = vunpack.c.l.b16 %v375
    %v543 = vunpack.c.l.b16 %v376
    %v544 = vunpack.c.l.b16 %v377
    %v545 = vunpack.c.l.b16 %v378
    %v546 = vunpack.c.l.b16 %v379
    %v547 = vunpack.c.l.b16 %v380
    %v548 = vunpack.c.l.b16 %v381
    %v549 = vunpack.c.l.b16 %v382
    %v550 = vunpack.c.l.b16 %v383
    %v551 = vunpack.c.l.b16 %v384
    %v552 = vunpack.c.l.b16 %v385
    %v553 = vunpack.c.l.b16 %v386
    %v554 = vunpack.c.l.b16 %v387
    %v555 = vunpack.c.l.b16 %v388
    %v556 = vunpack.c.l.b16 %v389
    %v557 = vunpack.c.l.b16 %v390
    %v558 = vunpack.c.l.b16 %v391
    %v559 = vunpack.c.l.b16 %v392
    %v560 = vunpack.c.l.b16 %v393
    %v561 = vunpack.c.l.b16 %v394
    %v562 = vunpack.c.l.b16 %v395
    %v563 = vunpack.c.l.b16 %v396
    %v564 = vunpack.c.l.b16 %v397
    %v565 = vunpack.c.l.b16 %v398
    %v566 = vunpack.c.l.b16 %v399
    %v567 = vunpack.c.l.b16 %v400
    %v568 = vunpack.c.l.b16 %v401
    %v569 = vunpack.c.l.b16 %v402
    %v570 = vunpack.c.l.b16 %v403
    %v571 = vunpack.c.l.b16 %v404
    %v572 = vunpack.c.l.b16 %v405
    %v573 = vpack.c.b16 %v494, %v493
    %v574 = vpack.c.b16 %v496, %v495
    %v575 = vpack.c.b16 %v498, %v497
    %v576 = vpack.c.b16 %v500, %v499
    %v577 = vpack.c.b16 %v502, %v501
    %v578 = vpack.c.b16 %v504, %v503
    %v579 = vpack.c.b16 %v506, %v505
    %v580 = vpack.c.b16 %v508, %v507
    %v581 = vpack.c.b16 %v510, %v509
    %v582 = vpack.c.b16 %v512, %v511
    %v583 = vpack.c.b16 %v514, %v513
    %v584 = vpack.c.b16 %v516, %v515
    %v585 = vpack.c.b16 %v518, %v517
    %v586 = vpack.c.b16 %v520, %v519
    %v587 = vpack.c.b16 %v522, %v521
    %v588 = vpack.c.b16 %v524, %v523
    %v589 = vpack.c.b16 %v526, %v525
    %v590 = vpack.c.b16 %v528, %v527
    %v591 = vpack.c.b16 %v530, %v529
    %v592 = vpack.c.b16 %v532, %v531
    %v593 = vpack.c.b16 %v534, %v533
    %v594 = vpack.c.b16 %v536, %v535
    %v595 = vpack.c.b16 %v538, %v537
    %v596 = vpack.c.b16 %v540, %v539
    %v597 = vpack.c.b16 %v542, %v541
    %v598 = vpack.c.b16 %v544, %v543
    %v599 = vpack.c.b16 %v546, %v545
    %v600 = vpack.c.b16 %v548, %v547
    %v601 = vpack.c.b16 %v550, %v549
    %v602 = vpack.c.b16 %v552, %v551
    %v603 = vpack.c.b16 %v554, %v553
    %v604 = vpack.c.b16 %v556, %v555
    %v605 = vpack.c.b16 %v558, %v557
    %v606 = vpack.c.b16 %v560, %v559
    %v607 = vpack.c.b16 %v562, %v561
    %v608 = vpack.c.b16 %v564, %v563
    %v609 = vpack.c.b16 %v566, %v565
    %v610 = vpack.c.b16 %v568, %v567
    %v611 = vpack.c.b16 %v570, %v569
    %v612 = vpack.c.b16 %v572, %v571
    %653 = vmatprep.subr.bf16.mxu0 0
    %654 = vmatpush1.bf16.msra.mxu0 %v573
    %655 = vmatprep.subr.bf16.mxu0 0
    %656 = vmatpush1.bf16.msra.mxu0 %v574
    %657 = vmatprep.subr.bf16.mxu0 0
    %658 = vmatpush1.bf16.msra.mxu0 %v575
    %659 = vmatprep.subr.bf16.mxu0 0
    %660 = vmatpush1.bf16.msra.mxu0 %v576
    %661 = vmatprep.subr.bf16.mxu0 0
    %662 = vmatpush1.bf16.msra.mxu0 %v577
    %663 = vmatprep.subr.bf16.mxu0 0
    %664 = vmatpush1.bf16.msra.mxu0 %v578
    %665 = vmatprep.subr.bf16.mxu0 0
    %666 = vmatpush1.bf16.msra.mxu0 %v579
    %667 = vmatprep.subr.bf16.mxu0 0
    %668 = vmatpush1.bf16.msra.mxu0 %v580
    %669 = vmatprep.subr.bf16.mxu0 0
    %670 = vmatpush1.bf16.msra.mxu0 %v581
    %671 = vmatprep.subr.bf16.mxu0 0
    %672 = vmatpush1.bf16.msra.mxu0 %v582
    %673 = vmatprep.subr.bf16.mxu0 0
    %674 = vmatpush1.bf16.msra.mxu0 %v583
    %675 = vmatprep.subr.bf16.mxu0 0
    %676 = vmatpush1.bf16.msra.mxu0 %v584
    %677 = vmatprep.subr.bf16.mxu0 0
    %678 = vmatpush1.bf16.msra.mxu0 %v585
    %679 = vmatprep.subr.bf16.mxu0 0
    %680 = vmatpush1.bf16.msra.mxu0 %v586
    %681 = vmatprep.subr.bf16.mxu0 0
    %682 = vmatpush1.bf16.msra.mxu0 %v587
    %683 = vmatprep.subr.bf16.mxu0 0
    %684 = vmatpush1.bf16.msra.mxu0 %v588
    %685 = vmatprep.mubr.bf16.mxu0 %v322
    %686 = vmatmul.mubr.bf16.gmra.mrb[0].mxu0 %v321
    %v687 = vpop.f32.mrb[0].mxu0
    %v688 = vadd.f32 %v411, %v687
    %v689 = vpop.f32.mrb[0].mxu0
    %v690 = vpop.f32.mrb[0].mxu0
    %v691 = vpop.f32.mrb[0].mxu0
    %692 = vdwg.mxu0
    %693 = vmatprep.subr.bf16.mxu0 0
    %694 = vmatpush1.bf16.msra.mxu0 %v589
    %695 = vmatprep.subr.bf16.mxu0 0
    %696 = vmatpush1.bf16.msra.mxu0 %v590
    %697 = vmatprep.subr.bf16.mxu0 0
    %698 = vmatpush1.bf16.msra.mxu0 %v591
    %699 = vmatprep.subr.bf16.mxu0 0
    %700 = vmatpush1.bf16.msra.mxu0 %v592
    %701 = vmatprep.subr.bf16.mxu0 0
    %702 = vmatpush1.bf16.msra.mxu0 %v593
    %703 = vmatprep.subr.bf16.mxu0 0
    %704 = vmatpush1.bf16.msra.mxu0 %v594
    %705 = vmatprep.subr.bf16.mxu0 0
    %706 = vmatpush1.bf16.msra.mxu0 %v595
    %707 = vmatprep.subr.bf16.mxu0 0
    %708 = vmatpush1.bf16.msra.mxu0 %v596
    %709 = vmatprep.subr.bf16.mxu0 0
    %710 = vmatpush1.bf16.msra.mxu0 %v597
    %711 = vmatprep.subr.bf16.mxu0 0
    %712 = vmatpush1.bf16.msra.mxu0 %v598
    %713 = vmatprep.subr.bf16.mxu0 0
    %714 = vmatpush1.bf16.msra.mxu0 %v599
    %715 = vmatprep.subr.bf16.mxu0 0
    %716 = vmatpush1.bf16.msra.mxu0 %v600
    %717 = vmatprep.subr.bf16.mxu0 0
    %718 = vmatpush1.bf16.msra.mxu0 %v601
    %719 = vmatprep.subr.bf16.mxu0 0
    %720 = vmatpush1.bf16.msra.mxu0 %v602
    %721 = vmatprep.subr.bf16.mxu0 0
    %722 = vmatpush1.bf16.msra.mxu0 %v603
    %723 = vmatprep.subr.bf16.mxu0 0
    %724 = vmatpush1.bf16.msra.mxu0 %v604
    %725 = vmatprep.mubr.bf16.mxu0 %v324
    %726 = vmatmul.mubr.bf16.gmra.mrb[0].mxu0 %v323
    %v727 = vpop.f32.mrb[0].mxu0
    %v728 = vadd.f32 %v688, %v727
    %v729 = vpop.f32.mrb[0].mxu0
    %v730 = vpop.f32.mrb[0].mxu0
    %v731 = vpop.f32.mrb[0].mxu0
    %732 = vdwg.mxu0
    %733 = vmatprep.subr.bf16.mxu0 0
    %734 = vmatpush1.bf16.msra.mxu0 %v605
    %735 = vmatprep.subr.bf16.mxu0 0
    %736 = vmatpush1.bf16.msra.mxu0 %v606
    %737 = vmatprep.subr.bf16.mxu0 0
    %738 = vmatpush1.bf16.msra.mxu0 %v607
    %739 = vmatprep.subr.bf16.mxu0 0
    %740 = vmatpush1.bf16.msra.mxu0 %v608
    %741 = vmatprep.subr.bf16.mxu0 0
    %742 = vmatpush1.bf16.msra.mxu0 %v609
    %743 = vmatprep.subr.bf16.mxu0 0
    %744 = vmatpush1.bf16.msra.mxu0 %v610
    %745 = vmatprep.subr.bf16.mxu0 0
    %746 = vmatpush1.bf16.msra.mxu0 %v611
    %747 = vmatprep.subr.bf16.mxu0 0
    %748 = vmatpush1.bf16.msra.mxu0 %v612
    %749 = vmatprep.subr.bf16.mxu0 0
    %750 = vmatpush1.bf16.msra.mxu0 0
    %751 = vmatprep.subr.bf16.mxu0 0
    %752 = vmatpush1.bf16.msra.mxu0 0
    %753 = vmatprep.subr.bf16.mxu0 0
    %754 = vmatpush1.bf16.msra.mxu0 0
    %755 = vmatprep.subr.bf16.mxu0 0
    %756 = vmatpush1.bf16.msra.mxu0 0
    %757 = vmatprep.subr.bf16.mxu0 0
    %758 = vmatpush1.bf16.msra.mxu0 0
    %759 = vmatprep.subr.bf16.mxu0 0
    %760 = vmatpush1.bf16.msra.mxu0 0
    %761 = vmatprep.subr.bf16.mxu0 0
    %762 = vmatpush1.bf16.msra.mxu0 0
    %763 = vmatprep.subr.bf16.mxu0 0
    %764 = vmatpush1.bf16.msra.mxu0 0
    %765 = vmatprep.mubr.bf16.mxu0 0
    %766 = vmatmul.mubr.bf16.gmra.mrb[0].mxu0 %v325
    %v767 = vpop.f32.mrb[0].mxu0
    %v768 = vadd.f32 %v728, %v767
    %v769 = vpop.f32.mrb[0].mxu0
    %v770 = vpop.f32.mrb[0].mxu0
    %v771 = vpop.f32.mrb[0].mxu0
    %772 = vdwg.mxu0
    %v773 = vmax.f32 %v768, 0.0
    %v774 = vpack.c.bf16 %v773, %v773
    %v775 = vld [vmem:[#allocation8] sm:$0xff]
    %v776 = vld [vmem:[#allocation8 + $0x8] sm:$0xff]
    %v777 = vld [vmem:[#allocation8 + $0x10] sm:$0xff]
    %v778 = vld [vmem:[#allocation8 + $0x18] sm:$0xff]
    %v779 = vld [vmem:[#allocation8 + $0x20] sm:$0xff]
    %v780 = vld [vmem:[#allocation8 + $0x28] sm:$0xff]
    %v781 = vld [vmem:[#allocation8 + $0x30] sm:$0xff]
    %v782 = vld [vmem:[#allocation8 + $0x38] sm:$0xff]
    %v783 = vld [vmem:[#allocation8 + $0x40] sm:$0xff]
    %v784 = vld [vmem:[#allocation8 + $0x48] sm:$0xff]
    %v785 = vld [vmem:[#allocation8 + $0x50] sm:$0xff]
    %v786 = vld [vmem:[#allocation8 + $0x58] sm:$0xff]
    %v787 = vld [vmem:[#allocation8 + $0x60] sm:$0xff]
    %v788 = vld [vmem:[#allocation8 + $0x68] sm:$0xff]
    %v789 = vld [vmem:[#allocation8 + $0x70] sm:$0xff]
    %v790 = vld [vmem:[#allocation8 + $0x78] sm:$0xff]
    %v791 = vld [vmem:[#allocation8 + $0x80] sm:$0xff]
    %v792 = vld [vmem:[#allocation8 + $0x88] sm:$0xff]
    %v793 = vld [vmem:[#allocation8 + $0x90] sm:$0xff]
    %v794 = vld [vmem:[#allocation8 + $0x98] sm:$0xff]
    %v795 = vld [vmem:[#allocation8 + $0xa0] sm:$0xff]
    %v796 = vld [vmem:[#allocation8 + $0xa8] sm:$0xff]
    %v797 = vld [vmem:[#allocation8 + $0xb0] sm:$0xff]
    %v798 = vld [vmem:[#allocation8 + $0xb8] sm:$0xff]
    %v799 = vld [vmem:[#allocation8 + $0xc0] sm:$0xff]
    %v800 = vld [vmem:[#allocation8 + $0xc8] sm:$0xff]
    %v801 = vld [vmem:[#allocation8 + $0xd0] sm:$0xff]
    %v802 = vld [vmem:[#allocation8 + $0xd8] sm:$0xff]
    %v803 = vld [vmem:[#allocation8 + $0xe0] sm:$0xff]
    %v804 = vld [vmem:[#allocation8 + $0xe8] sm:$0xff]
    %v805 = vld [vmem:[#allocation8 + $0xf0] sm:$0xff]
    %v806 = vld [vmem:[#allocation8 + $0xf8] sm:$0xff]
    %v807 = vld [vmem:[%s6] sm:$0xf]
    %v809 = vlaneseq
    %v810 = vshrl.u32 %v809, 7
    %v811 = vsub.s32 0, %v810
    %v812 = vrot.slane %v807, %v811
    %v813 = vlaneseq
    %v814 = vshrl.u32 %v813, 7
    %v815 = vsub.s32 1, %v814
    %v816 = vrot.slane %v807, %v815
    %v817 = vlaneseq
    %v818 = vshrl.u32 %v817, 7
    %v819 = vsub.s32 2, %v818
    %v820 = vrot.slane %v807, %v819
    %v821 = vlaneseq
    %v822 = vshrl.u32 %v821, 7
    %v823 = vsub.s32 3, %v822
    %v824 = vrot.slane %v807, %v823
    %v861 = vunpack.c.l.b16 %v775
    %v862 = vunpack.c.h.b16 %v775
    %v863 = vunpack.c.l.b16 %v776
    %v864 = vunpack.c.h.b16 %v776
    %v865 = vunpack.c.l.b16 %v777
    %v866 = vunpack.c.h.b16 %v777
    %v867 = vunpack.c.l.b16 %v778
    %v868 = vunpack.c.h.b16 %v778
    %v869 = vunpack.c.l.b16 %v779
    %v870 = vunpack.c.h.b16 %v779
    %v871 = vunpack.c.l.b16 %v780
    %v872 = vunpack.c.h.b16 %v780
    %v873 = vunpack.c.l.b16 %v781
    %v874 = vunpack.c.h.b16 %v781
    %v875 = vunpack.c.l.b16 %v782
    %v876 = vunpack.c.h.b16 %v782
    %v877 = vunpack.c.l.b16 %v783
    %v878 = vunpack.c.h.b16 %v783
    %v879 = vunpack.c.l.b16 %v784
    %v880 = vunpack.c.h.b16 %v784
    %v881 = vunpack.c.l.b16 %v785
    %v882 = vunpack.c.h.b16 %v785
    %v883 = vunpack.c.l.b16 %v786
    %v884 = vunpack.c.h.b16 %v786
    %v885 = vunpack.c.l.b16 %v787
    %v886 = vunpack.c.h.b16 %v787
    %v887 = vunpack.c.l.b16 %v788
    %v888 = vunpack.c.h.b16 %v788
    %v889 = vunpack.c.l.b16 %v789
    %v890 = vunpack.c.h.b16 %v789
    %v891 = vunpack.c.l.b16 %v790
    %v892 = vunpack.c.h.b16 %v790
    %v893 = vunpack.c.l.b16 %v791
    %v894 = vunpack.c.h.b16 %v791
    %v895 = vunpack.c.l.b16 %v792
    %v896 = vunpack.c.h.b16 %v792
    %v897 = vunpack.c.l.b16 %v793
    %v898 = vunpack.c.h.b16 %v793
    %v899 = vunpack.c.l.b16 %v794
    %v900 = vunpack.c.h.b16 %v794
    %v901 = vunpack.c.l.b16 %v795
    %v902 = vunpack.c.h.b16 %v795
    %v903 = vunpack.c.l.b16 %v796
    %v904 = vunpack.c.h.b16 %v796
    %v905 = vunpack.c.l.b16 %v797
    %v906 = vunpack.c.h.b16 %v797
    %v907 = vunpack.c.l.b16 %v798
    %v908 = vunpack.c.h.b16 %v798
    %v909 = vunpack.c.l.b16 %v799
    %v910 = vunpack.c.h.b16 %v799
    %v911 = vunpack.c.l.b16 %v800
    %v912 = vunpack.c.h.b16 %v800
    %v913 = vunpack.c.l.b16 %v801
    %v914 = vunpack.c.h.b16 %v801
    %v915 = vunpack.c.l.b16 %v802
    %v916 = vunpack.c.h.b16 %v802
    %v917 = vunpack.c.l.b16 %v803
    %v918 = vunpack.c.h.b16 %v803
    %v919 = vunpack.c.l.b16 %v804
    %v920 = vunpack.c.h.b16 %v804
    %v921 = vunpack.c.l.b16 %v805
    %v922 = vunpack.c.h.b16 %v805
    %v923 = vunpack.c.l.b16 %v806
    %v924 = vunpack.c.h.b16 %v806
    %v925 = vpack.c.b16 %v865, %v861
    %v926 = vpack.c.b16 %v866, %v862
    %v927 = vpack.c.b16 %v867, %v863
    %v928 = vpack.c.b16 %v868, %v864
    %v929 = vpack.c.b16 %v873, %v869
    %v930 = vpack.c.b16 %v874, %v870
    %v931 = vpack.c.b16 %v875, %v871
    %v932 = vpack.c.b16 %v876, %v872
    %v933 = vpack.c.b16 %v881, %v877
    %v934 = vpack.c.b16 %v882, %v878
    %v935 = vpack.c.b16 %v883, %v879
    %v936 = vpack.c.b16 %v884, %v880
    %v937 = vpack.c.b16 %v889, %v885
    %v938 = vpack.c.b16 %v890, %v886
    %v939 = vpack.c.b16 %v891, %v887
    %v940 = vpack.c.b16 %v892, %v888
    %v941 = vpack.c.b16 %v897, %v893
    %v942 = vpack.c.b16 %v898, %v894
    %v943 = vpack.c.b16 %v899, %v895
    %v944 = vpack.c.b16 %v900, %v896
    %v945 = vpack.c.b16 %v905, %v901
    %v946 = vpack.c.b16 %v906, %v902
    %v947 = vpack.c.b16 %v907, %v903
    %v948 = vpack.c.b16 %v908, %v904
    %v949 = vpack.c.b16 %v913, %v909
    %v950 = vpack.c.b16 %v914, %v910
    %v951 = vpack.c.b16 %v915, %v911
    %v952 = vpack.c.b16 %v916, %v912
    %v953 = vpack.c.b16 %v921, %v917
    %v954 = vpack.c.b16 %v922, %v918
    %v955 = vpack.c.b16 %v923, %v919
    %v956 = vpack.c.b16 %v924, %v920
    %989 = vmatprep.subr.bf16.mxu0 %v926
    %990 = vmatpush1.bf16.msra.mxu0 %v925
    %991 = vmatprep.subr.bf16.mxu0 %v930
    %992 = vmatpush1.bf16.msra.mxu0 %v929
    %993 = vmatprep.subr.bf16.mxu0 %v934
    %994 = vmatpush1.bf16.msra.mxu0 %v933
    %995 = vmatprep.subr.bf16.mxu0 %v938
    %996 = vmatpush1.bf16.msra.mxu0 %v937
    %997 = vmatprep.subr.bf16.mxu0 %v942
    %998 = vmatpush1.bf16.msra.mxu0 %v941
    %999 = vmatprep.subr.bf16.mxu0 %v946
    %1000 = vmatpush1.bf16.msra.mxu0 %v945
    %1001 = vmatprep.subr.bf16.mxu0 %v950
    %1002 = vmatpush1.bf16.msra.mxu0 %v949
    %1003 = vmatprep.subr.bf16.mxu0 %v954
    %1004 = vmatpush1.bf16.msra.mxu0 %v953
    %1005 = vmatprep.subr.bf16.mxu0 0
    %1006 = vmatpush1.bf16.msra.mxu0 0
    %1007 = vmatprep.subr.bf16.mxu0 0
    %1008 = vmatpush1.bf16.msra.mxu0 0
    %1009 = vmatprep.subr.bf16.mxu0 0
    %1010 = vmatpush1.bf16.msra.mxu0 0
    %1011 = vmatprep.subr.bf16.mxu0 0
    %1012 = vmatpush1.bf16.msra.mxu0 0
    %1013 = vmatprep.subr.bf16.mxu0 0
    %1014 = vmatpush1.bf16.msra.mxu0 0
    %1015 = vmatprep.subr.bf16.mxu0 0
    %1016 = vmatpush1.bf16.msra.mxu0 0
    %1017 = vmatprep.subr.bf16.mxu0 0
    %1018 = vmatpush1.bf16.msra.mxu0 0
    %1019 = vmatprep.subr.bf16.mxu0 0
    %1020 = vmatpush1.bf16.msra.mxu0 0
    %1021 = vmatprep.mubr.bf16.mxu0 0
    %1022 = vmatmul.mubr.bf16.gmra.mrb[0].mxu0 %v774
    %v1023 = vpop.f32.mrb[0].mxu0
    %v1024 = vadd.f32 %v812, %v1023
    %v1025 = vpop.f32.mrb[0].mxu0
    %v1026 = vadd.f32 %v816, %v1025
    %v1027 = vpop.f32.mrb[0].mxu0
    %v1028 = vpop.f32.mrb[0].mxu0
    %1029 = vdwg.mxu0
    %1030 = vmatprep.subr.bf16.mxu0 %v928
    %1031 = vmatpush1.bf16.msra.mxu0 %v927
    %1032 = vmatprep.subr.bf16.mxu0 %v932
    %1033 = vmatpush1.bf16.msra.mxu0 %v931
    %1034 = vmatprep.subr.bf16.mxu0 %v936
    %1035 = vmatpush1.bf16.msra.mxu0 %v935
    %1036 = vmatprep.subr.bf16.mxu0 %v940
    %1037 = vmatpush1.bf16.msra.mxu0 %v939
    %1038 = vmatprep.subr.bf16.mxu0 %v944
    %1039 = vmatpush1.bf16.msra.mxu0 %v943
    %1040 = vmatprep.subr.bf16.mxu0 %v948
    %1041 = vmatpush1.bf16.msra.mxu0 %v947
    %1042 = vmatprep.subr.bf16.mxu0 %v952
    %1043 = vmatpush1.bf16.msra.mxu0 %v951
    %1044 = vmatprep.subr.bf16.mxu0 %v956
    %1045 = vmatpush1.bf16.msra.mxu0 %v955
    %1046 = vmatprep.subr.bf16.mxu0 0
    %1047 = vmatpush1.bf16.msra.mxu0 0
    %1048 = vmatprep.subr.bf16.mxu0 0
    %1049 = vmatpush1.bf16.msra.mxu0 0
    %1050 = vmatprep.subr.bf16.mxu0 0
    %1051 = vmatpush1.bf16.msra.mxu0 0
    %1052 = vmatprep.subr.bf16.mxu0 0
    %1053 = vmatpush1.bf16.msra.mxu0 0
    %1054 = vmatprep.subr.bf16.mxu0 0
    %1055 = vmatpush1.bf16.msra.mxu0 0
    %1056 = vmatprep.subr.bf16.mxu0 0
    %1057 = vmatpush1.bf16.msra.mxu0 0
    %1058 = vmatprep.subr.bf16.mxu0 0
    %1059 = vmatpush1.bf16.msra.mxu0 0
    %1060 = vmatprep.subr.bf16.mxu0 0
    %1061 = vmatpush1.bf16.msra.mxu0 0
    %1062 = vmatprep.mubr.bf16.mxu0 0
    %1063 = vmatmul.mubr.bf16.gmra.mrb[0].mxu0 %v774
    %v1064 = vpop.f32.mrb[0].mxu0
    %v1065 = vadd.f32 %v820, %v1064
    %v1066 = vpop.f32.mrb[0].mxu0
    %v1067 = vadd.f32 %v824, %v1066
    %v1068 = vpop.f32.mrb[0].mxu0
    %v1069 = vpop.f32.mrb[0].mxu0
    %1070 = vdwg.mxu0
    %v1071 = vmax.f32 %v1024, 0.0
    %v1072 = vmax.f32 %v1026, 0.0
    %v1073 = vmax.f32 %v1065, 0.0
    %v1074 = vmax.f32 %v1067, 0.0
    %v1075 = vpack.c.bf16 %v1071, %v1071
    %v1076 = vpack.c.bf16 %v1072, %v1072
    %v1077 = vpack.c.bf16 %v1073, %v1073
    %v1078 = vpack.c.bf16 %v1074, %v1074
    %v1079 = vld [vmem:[#allocation9] sm:$0xf]
    %v1080 = vld [vmem:[#allocation9 + $0x4] sm:$0xf]
    %v1081 = vld [vmem:[#allocation9 + $0x8] sm:$0xf]
    %v1082 = vld [vmem:[#allocation9 + $0xc] sm:$0xf]
    %v1083 = vld [vmem:[#allocation9 + $0x10] sm:$0xf]
    %v1084 = vld [vmem:[#allocation9 + $0x14] sm:$0xf]
    %v1085 = vld [vmem:[#allocation9 + $0x18] sm:$0xf]
    %v1086 = vld [vmem:[#allocation9 + $0x1c] sm:$0xf]
    %v1087 = vld [vmem:[#allocation9 + $0x20] sm:$0xf]
    %v1088 = vld [vmem:[#allocation9 + $0x24] sm:$0xf]
    %v1089 = vld [vmem:[#allocation9 + $0x28] sm:$0xf]
    %v1090 = vld [vmem:[#allocation9 + $0x2c] sm:$0xf]
    %v1091 = vld [vmem:[#allocation9 + $0x30] sm:$0xf]
    %v1092 = vld [vmem:[#allocation9 + $0x34] sm:$0xf]
    %v1093 = vld [vmem:[#allocation9 + $0x38] sm:$0xf]
    %v1094 = vld [vmem:[#allocation9 + $0x3c] sm:$0xf]
    %v1095 = vld [vmem:[#allocation9 + $0x40] sm:$0xf]
    %v1096 = vld [vmem:[#allocation9 + $0x44] sm:$0xf]
    %v1097 = vld [vmem:[#allocation9 + $0x48] sm:$0xf]
    %v1098 = vld [vmem:[#allocation9 + $0x4c] sm:$0xf]
    %v1099 = vld [vmem:[#allocation9 + $0x50] sm:$0xf]
    %v1100 = vld [vmem:[#allocation9 + $0x54] sm:$0xf]
    %v1101 = vld [vmem:[#allocation9 + $0x58] sm:$0xf]
    %v1102 = vld [vmem:[#allocation9 + $0x5c] sm:$0xf]
    %v1103 = vld [vmem:[#allocation9 + $0x60] sm:$0xf]
    %v1104 = vld [vmem:[#allocation9 + $0x64] sm:$0xf]
    %v1105 = vld [vmem:[#allocation9 + $0x68] sm:$0xf]
    %v1106 = vld [vmem:[#allocation9 + $0x6c] sm:$0xf]
    %v1107 = vld [vmem:[#allocation9 + $0x70] sm:$0xf]
    %v1108 = vld [vmem:[#allocation9 + $0x74] sm:$0xf]
    %v1109 = vld [vmem:[#allocation9 + $0x78] sm:$0xf]
    %v1110 = vld [vmem:[#allocation9 + $0x7c] sm:$0xf]
    %v1111 = vld [vmem:[#allocation9 + $0x80] sm:$0xf]
    %v1112 = vld [vmem:[#allocation9 + $0x84] sm:$0xf]
    %v1113 = vld [vmem:[#allocation9 + $0x88] sm:$0xf]
    %v1114 = vld [vmem:[#allocation9 + $0x8c] sm:$0xf]
    %v1115 = vld [vmem:[#allocation9 + $0x90] sm:$0xf]
    %v1116 = vld [vmem:[#allocation9 + $0x94] sm:$0xf]
    %v1117 = vld [vmem:[#allocation9 + $0x98] sm:$0xf]
    %v1118 = vld [vmem:[#allocation9 + $0x9c] sm:$0xf]
    %v1119 = vld [vmem:[#allocation9 + $0xa0] sm:$0xf]
    %v1120 = vld [vmem:[#allocation9 + $0xa4] sm:$0xf]
    %v1121 = vld [vmem:[#allocation9 + $0xa8] sm:$0xf]
    %v1122 = vld [vmem:[#allocation9 + $0xac] sm:$0xf]
    %v1123 = vld [vmem:[#allocation9 + $0xb0] sm:$0xf]
    %v1124 = vld [vmem:[#allocation9 + $0xb4] sm:$0xf]
    %v1125 = vld [vmem:[#allocation9 + $0xb8] sm:$0xf]
    %v1126 = vld [vmem:[#allocation9 + $0xbc] sm:$0xf]
    %v1127 = vld [vmem:[#allocation9 + $0xc0] sm:$0xf]
    %v1128 = vld [vmem:[#allocation9 + $0xc4] sm:$0xf]
    %v1129 = vld [vmem:[#allocation9 + $0xc8] sm:$0xf]
    %v1130 = vld [vmem:[#allocation9 + $0xcc] sm:$0xf]
    %v1131 = vld [vmem:[#allocation9 + $0xd0] sm:$0xf]
    %v1132 = vld [vmem:[#allocation9 + $0xd4] sm:$0xf]
    %v1133 = vld [vmem:[#allocation9 + $0xd8] sm:$0xf]
    %v1134 = vld [vmem:[#allocation9 + $0xdc] sm:$0xf]
    %v1135 = vld [vmem:[#allocation9 + $0xe0] sm:$0xf]
    %v1136 = vld [vmem:[#allocation9 + $0xe4] sm:$0xf]
    %v1137 = vld [vmem:[#allocation9 + $0xe8] sm:$0xf]
    %v1138 = vld [vmem:[#allocation9 + $0xec] sm:$0xf]
    %v1139 = vld [vmem:[#allocation9 + $0xf0] sm:$0xf]
    %v1140 = vld [vmem:[#allocation9 + $0xf4] sm:$0xf]
    %v1141 = vld [vmem:[#allocation9 + $0xf8] sm:$0xf]
    %v1142 = vld [vmem:[#allocation9 + $0xfc] sm:$0xf]
    %v1143 = vld [vmem:[%s8] sm:$0x1]
    %v1145 = vlaneseq
    %v1146 = vshrl.u32 %v1145, 7
    %v1147 = vsub.s32 0, %v1146
    %v1148 = vrot.slane %v1143, %v1147
    %v1214 = vunpack.c.l.b16 %v1079
    %v1215 = vunpack.c.l.b16 %v1080
    %v1216 = vunpack.c.l.b16 %v1081
    %v1217 = vunpack.c.l.b16 %v1082
    %v1218 = vunpack.c.l.b16 %v1083
    %v1219 = vunpack.c.l.b16 %v1084
    %v1220 = vunpack.c.l.b16 %v1085
    %v1221 = vunpack.c.l.b16 %v1086
    %v1222 = vunpack.c.l.b16 %v1087
    %v1223 = vunpack.c.l.b16 %v1088
    %v1224 = vunpack.c.l.b16 %v1089
    %v1225 = vunpack.c.l.b16 %v1090
    %v1226 = vunpack.c.l.b16 %v1091
    %v1227 = vunpack.c.l.b16 %v1092
    %v1228 = vunpack.c.l.b16 %v1093
    %v1229 = vunpack.c.l.b16 %v1094
    %v1230 = vunpack.c.l.b16 %v1095
    %v1231 = vunpack.c.l.b16 %v1096
    %v1232 = vunpack.c.l.b16 %v1097
    %v1233 = vunpack.c.l.b16 %v1098
    %v1234 = vunpack.c.l.b16 %v1099
    %v1235 = vunpack.c.l.b16 %v1100
    %v1236 = vunpack.c.l.b16 %v1101
    %v1237 = vunpack.c.l.b16 %v1102
    %v1238 = vunpack.c.l.b16 %v1103
    %v1239 = vunpack.c.l.b16 %v1104
    %v1240 = vunpack.c.l.b16 %v1105
    %v1241 = vunpack.c.l.b16 %v1106
    %v1242 = vunpack.c.l.b16 %v1107
    %v1243 = vunpack.c.l.b16 %v1108
    %v1244 = vunpack.c.l.b16 %v1109
    %v1245 = vunpack.c.l.b16 %v1110
    %v1246 = vunpack.c.l.b16 %v1111
    %v1247 = vunpack.c.l.b16 %v1112
    %v1248 = vunpack.c.l.b16 %v1113
    %v1249 = vunpack.c.l.b16 %v1114
    %v1250 = vunpack.c.l.b16 %v1115
    %v1251 = vunpack.c.l.b16 %v1116
    %v1252 = vunpack.c.l.b16 %v1117
    %v1253 = vunpack.c.l.b16 %v1118
    %v1254 = vunpack.c.l.b16 %v1119
    %v1255 = vunpack.c.l.b16 %v1120
    %v1256 = vunpack.c.l.b16 %v1121
    %v1257 = vunpack.c.l.b16 %v1122
    %v1258 = vunpack.c.l.b16 %v1123
    %v1259 = vunpack.c.l.b16 %v1124
    %v1260 = vunpack.c.l.b16 %v1125
    %v1261 = vunpack.c.l.b16 %v1126
    %v1262 = vunpack.c.l.b16 %v1127
    %v1263 = vunpack.c.l.b16 %v1128
    %v1264 = vunpack.c.l.b16 %v1129
    %v1265 = vunpack.c.l.b16 %v1130
    %v1266 = vunpack.c.l.b16 %v1131
    %v1267 = vunpack.c.l.b16 %v1132
    %v1268 = vunpack.c.l.b16 %v1133
    %v1269 = vunpack.c.l.b16 %v1134
    %v1270 = vunpack.c.l.b16 %v1135
    %v1271 = vunpack.c.l.b16 %v1136
    %v1272 = vunpack.c.l.b16 %v1137
    %v1273 = vunpack.c.l.b16 %v1138
    %v1274 = vunpack.c.l.b16 %v1139
    %v1275 = vunpack.c.l.b16 %v1140
    %v1276 = vunpack.c.l.b16 %v1141
    %v1277 = vunpack.c.l.b16 %v1142
    %v1278 = vpack.c.b16 %v1215, %v1214
    %v1279 = vpack.c.b16 %v1217, %v1216
    %v1280 = vpack.c.b16 %v1219, %v1218
    %v1281 = vpack.c.b16 %v1221, %v1220
    %v1282 = vpack.c.b16 %v1223, %v1222
    %v1283 = vpack.c.b16 %v1225, %v1224
    %v1284 = vpack.c.b16 %v1227, %v1226
    %v1285 = vpack.c.b16 %v1229, %v1228
    %v1286 = vpack.c.b16 %v1231, %v1230
    %v1287 = vpack.c.b16 %v1233, %v1232
    %v1288 = vpack.c.b16 %v1235, %v1234
    %v1289 = vpack.c.b16 %v1237, %v1236
    %v1290 = vpack.c.b16 %v1239, %v1238
    %v1291 = vpack.c.b16 %v1241, %v1240
    %v1292 = vpack.c.b16 %v1243, %v1242
    %v1293 = vpack.c.b16 %v1245, %v1244
    %v1294 = vpack.c.b16 %v1247, %v1246
    %v1295 = vpack.c.b16 %v1249, %v1248
    %v1296 = vpack.c.b16 %v1251, %v1250
    %v1297 = vpack.c.b16 %v1253, %v1252
    %v1298 = vpack.c.b16 %v1255, %v1254
    %v1299 = vpack.c.b16 %v1257, %v1256
    %v1300 = vpack.c.b16 %v1259, %v1258
    %v1301 = vpack.c.b16 %v1261, %v1260
    %v1302 = vpack.c.b16 %v1263, %v1262
    %v1303 = vpack.c.b16 %v1265, %v1264
    %v1304 = vpack.c.b16 %v1267, %v1266
    %v1305 = vpack.c.b16 %v1269, %v1268
    %v1306 = vpack.c.b16 %v1271, %v1270
    %v1307 = vpack.c.b16 %v1273, %v1272
    %v1308 = vpack.c.b16 %v1275, %v1274
    %v1309 = vpack.c.b16 %v1277, %v1276
    %1342 = vmatprep.subr.bf16.mxu0 0
    %1343 = vmatpush1.bf16.msra.mxu0 %v1278
    %1344 = vmatprep.subr.bf16.mxu0 0
    %1345 = vmatpush1.bf16.msra.mxu0 %v1279
    %1346 = vmatprep.subr.bf16.mxu0 0
    %1347 = vmatpush1.bf16.msra.mxu0 %v1280
    %1348 = vmatprep.subr.bf16.mxu0 0
    %1349 = vmatpush1.bf16.msra.mxu0 %v1281
    %1350 = vmatprep.subr.bf16.mxu0 0
    %1351 = vmatpush1.bf16.msra.mxu0 %v1282
    %1352 = vmatprep.subr.bf16.mxu0 0
    %1353 = vmatpush1.bf16.msra.mxu0 %v1283
    %1354 = vmatprep.subr.bf16.mxu0 0
    %1355 = vmatpush1.bf16.msra.mxu0 %v1284
    %1356 = vmatprep.subr.bf16.mxu0 0
    %1357 = vmatpush1.bf16.msra.mxu0 %v1285
    %1358 = vmatprep.subr.bf16.mxu0 0
    %1359 = vmatpush1.bf16.msra.mxu0 %v1286
    %1360 = vmatprep.subr.bf16.mxu0 0
    %1361 = vmatpush1.bf16.msra.mxu0 %v1287
    %1362 = vmatprep.subr.bf16.mxu0 0
    %1363 = vmatpush1.bf16.msra.mxu0 %v1288
    %1364 = vmatprep.subr.bf16.mxu0 0
    %1365 = vmatpush1.bf16.msra.mxu0 %v1289
    %1366 = vmatprep.subr.bf16.mxu0 0
    %1367 = vmatpush1.bf16.msra.mxu0 %v1290
    %1368 = vmatprep.subr.bf16.mxu0 0
    %1369 = vmatpush1.bf16.msra.mxu0 %v1291
    %1370 = vmatprep.subr.bf16.mxu0 0
    %1371 = vmatpush1.bf16.msra.mxu0 %v1292
    %1372 = vmatprep.subr.bf16.mxu0 0
    %1373 = vmatpush1.bf16.msra.mxu0 %v1293
    %1374 = vmatprep.mubr.bf16.mxu0 %v1076
    %1375 = vmatmul.mubr.bf16.gmra.mrb[0].mxu0 %v1075
    %v1376 = vpop.f32.mrb[0].mxu0
    %v1377 = vadd.f32 %v1148, %v1376
    %v1378 = vpop.f32.mrb[0].mxu0
    %v1379 = vpop.f32.mrb[0].mxu0
    %v1380 = vpop.f32.mrb[0].mxu0
    %1381 = vdwg.mxu0
    %1382 = vmatprep.subr.bf16.mxu0 0
    %1383 = vmatpush1.bf16.msra.mxu0 %v1294
    %1384 = vmatprep.subr.bf16.mxu0 0
    %1385 = vmatpush1.bf16.msra.mxu0 %v1295
    %1386 = vmatprep.subr.bf16.mxu0 0
    %1387 = vmatpush1.bf16.msra.mxu0 %v1296
    %1388 = vmatprep.subr.bf16.mxu0 0
    %1389 = vmatpush1.bf16.msra.mxu0 %v1297
    %1390 = vmatprep.subr.bf16.mxu0 0
    %1391 = vmatpush1.bf16.msra.mxu0 %v1298
    %1392 = vmatprep.subr.bf16.mxu0 0
    %1393 = vmatpush1.bf16.msra.mxu0 %v1299
    %1394 = vmatprep.subr.bf16.mxu0 0
    %1395 = vmatpush1.bf16.msra.mxu0 %v1300
    %1396 = vmatprep.subr.bf16.mxu0 0
    %1397 = vmatpush1.bf16.msra.mxu0 %v1301
    %1398 = vmatprep.subr.bf16.mxu0 0
    %1399 = vmatpush1.bf16.msra.mxu0 %v1302
    %1400 = vmatprep.subr.bf16.mxu0 0
    %1401 = vmatpush1.bf16.msra.mxu0 %v1303
    %1402 = vmatprep.subr.bf16.mxu0 0
    %1403 = vmatpush1.bf16.msra.mxu0 %v1304
    %1404 = vmatprep.subr.bf16.mxu0 0
    %1405 = vmatpush1.bf16.msra.mxu0 %v1305
    %1406 = vmatprep.subr.bf16.mxu0 0
    %1407 = vmatpush1.bf16.msra.mxu0 %v1306
    %1408 = vmatprep.subr.bf16.mxu0 0
    %1409 = vmatpush1.bf16.msra.mxu0 %v1307
    %1410 = vmatprep.subr.bf16.mxu0 0
    %1411 = vmatpush1.bf16.msra.mxu0 %v1308
    %1412 = vmatprep.subr.bf16.mxu0 0
    %1413 = vmatpush1.bf16.msra.mxu0 %v1309
    %1414 = vmatprep.mubr.bf16.mxu0 %v1078
    %1415 = vmatmul.mubr.bf16.gmra.mrb[0].mxu0 %v1077
    %v1416 = vpop.f32.mrb[0].mxu0
    %v1417 = vadd.f32 %v1377, %v1416
    %v1418 = vpop.f32.mrb[0].mxu0
    %v1419 = vpop.f32.mrb[0].mxu0
    %v1420 = vpop.f32.mrb[0].mxu0
    %1421 = vdwg.mxu0
    %v1422 = vmax.f32 %v1417, 0.0
    %v1423 = vpack.c.bf16 %v1422, %v1422
    %v1424 = vld [vmem:[%s9] sm:$0x1]
    %v1425 = vld [vmem:[#allocation2] sm:$0x1]
    %1427 = vset.pattern.permute.xlu0 0
    %1428 = vperm.xlu0 %1427, %v1425
    %v1429 = vpop.permute.xlu0 %1428
    %v1431 = vlaneseq
    %v1432 = vshrl.u32 %v1431, 7
    %v1433 = vsub.s32 0, %v1432
    %v1434 = vrot.slane %v1429, %v1433
    %1435 = vmatprep.subr.bf16.mxu0 0
    %1436 = vmatpush1.bf16.xpose.msra.mxu0 %v1423
    %1437 = vmatprep.subr.bf16.mxu0 0
    %1438 = vmatpush1.bf16.xpose.msra.mxu0 0
    %1439 = vmatprep.subr.bf16.mxu0 0
    %1440 = vmatpush1.bf16.xpose.msra.mxu0 0
    %1441 = vmatprep.subr.bf16.mxu0 0
    %1442 = vmatpush1.bf16.xpose.msra.mxu0 0
    %1443 = vmatprep.subr.bf16.mxu0 0
    %1444 = vmatpush1.bf16.xpose.msra.mxu0 0
    %1445 = vmatprep.subr.bf16.mxu0 0
    %1446 = vmatpush1.bf16.xpose.msra.mxu0 0
    %1447 = vmatprep.subr.bf16.mxu0 0
    %1448 = vmatpush1.bf16.xpose.msra.mxu0 0
    %1449 = vmatprep.subr.bf16.mxu0 0
    %1450 = vmatpush1.bf16.xpose.msra.mxu0 0
    %1451 = vmatprep.subr.bf16.mxu0 0
    %1452 = vmatpush1.bf16.xpose.msra.mxu0 0
    %1453 = vmatprep.subr.bf16.mxu0 0
    %1454 = vmatpush1.bf16.xpose.msra.mxu0 0
    %1455 = vmatprep.subr.bf16.mxu0 0
    %1456 = vmatpush1.bf16.xpose.msra.mxu0 0
    %1457 = vmatprep.subr.bf16.mxu0 0
    %1458 = vmatpush1.bf16.xpose.msra.mxu0 0
    %1459 = vmatprep.subr.bf16.mxu0 0
    %1460 = vmatpush1.bf16.xpose.msra.mxu0 0
    %1461 = vmatprep.subr.bf16.mxu0 0
    %1462 = vmatpush1.bf16.xpose.msra.mxu0 0
    %1463 = vmatprep.subr.bf16.mxu0 0
    %1464 = vmatpush1.bf16.xpose.msra.mxu0 0
    %1465 = vmatprep.subr.bf16.mxu0 0
    %1466 = vmatpush1.bf16.xpose.msra.mxu0 0
    %1467 = vmatprep.mubr.bf16.mxu0 0
    %1468 = vmatmul.mubr.bf16.gmra.mrb[0].mxu0 %v1424
    %v1469 = vpop.f32.mrb[0].mxu0
    %v1470 = vadd.f32 %v1434, %v1469
    %v1471 = vpop.f32.mrb[0].mxu0
    %v1472 = vpop.f32.mrb[0].mxu0
    %v1473 = vpop.f32.mrb[0].mxu0
    %1474 = vdwg.mxu0
    %vm1475 = vcmask 8192
    %1476 = vst.msk [vmem:[#allocation11] sm:$0x1] %vm1475, %v1470
    // Predicated region
    $region62: #{tpu_custom_call.1} parent=1 // pred_check
      _
    $region63: #{tpu_custom_call.1} parent=1 // pred_check_branch
      %1478 = sbr.rel (0) target = $region65
    $region64: #{tpu_custom_call.1} parent=1 // pred_region
      %s1480 = ssub.s32 16, 16
      %1481 = vsyncadd [#allocation5], %s1480
      %s1483 = sshll.u32 [#allocation11], 4
      %s1484 = int_to_ptr.vmem [resolvable:$true] %s1483
      %1486 = dma.vmem_to_hbm [thread:$0]  %s1484, 16, %s11, [#allocation5]
    $region65: #{tpu_custom_call.1} parent=1 // pred_fallthru
      _
    // Predicated region
    $region66: #{tpu_custom_call.1} parent=1 // pred_check
      _
    $region67: #{tpu_custom_call.1} parent=1 // pred_check_branch
      %1488 = sbr.rel (0) target = $region69
    $region68: #{tpu_custom_call.1} parent=1 // pred_region
      %1489 = dma.done [#allocation5], 16
    $region69: #{tpu_custom_call.1} parent=1 // pred_fallthru
      _
    %1490 = vsyncpa [#allocation4], 1
    %1491 = vsyncpa [#allocation7], 1
    %1492 = vsyncpa [#allocation10], 1
    %1493 = vsyncpa [#allocation5], 1

</llo_original>
